<compile_context>
chip_gen: v7x
topology: tpu7x:2x2x1
jax: 0.10.0
libtpu: 0.0.40
codegen_flags: <defaults>
</compile_context>

<pallas_src>
import numpy as np
import jax
import jax.numpy as jnp
from jax import lax
from jax.experimental import pallas as pl
from jax.experimental.pallas import tpu as pltpu

# ----------------------------------------------------------------------------
# Problem constants (chess-style DualPathModel: 6 piece planes on an 8x8 board)
# ----------------------------------------------------------------------------
CIN, H, W = 6, 8, 8
CIN_P = 8                         # input channels padded to one sublane tile
C1, C2 = 16, 32
NREG = 4                          # AdaptiveAvgPool2d((2, 2)) -> 4 regions
CNN_FEAT = C2 * NREG              # 128
FEAT = CNN_FEAT + CIN_P           # 136 fused fc1 input rows (cnn + padded material)
FC1_OUT = 256
FC1_IN = CNN_FEAT + CIN           # 134 (PyTorch Linear(134, 256))
EPS = 1e-5                        # PyTorch BatchNorm default eps

PIX_PER_BOARD = H * W             # 64
BPC = 2                           # boards per grid step; CHUNK must stay %128 == 0.
CHUNK = BPC * PIX_PER_BOARD       # 128 pixels = one lane tile per step.
K1 = 9 * CIN_P                    # 72   im2col rows for conv1
K2 = 9 * C1                       # 144  im2col rows for conv2
POOLCOLS = (NREG + 1) * BPC       # fused pool + per-board-sum operator columns

# conv / fc2 / end-layer slab layout: shape (56, 256)
ROW_W1 = 0                        # rows 0:16   cols 0:72  -> folded conv1 weight, col 72 bias
ROW_W2 = C1                       # rows 16:48  cols 0:144 -> folded conv2 weight, col 144 bias
ROW_FC2 = C1 + C2                 # row  48     cols 0:256 -> fc2 weight (as a row)
ROW_EWM = ROW_FC2 + 1             # row  49     cols 0:6   -> end-layer material weights * mv
CW_ROWS, CW_COLS = 56, 256


# ----------------------------------------------------------------------------
# Pallas kernel (one board-chunk per grid step)
# ----------------------------------------------------------------------------
def dual_path_kernel(scal_ref, x_ref, mask_ref, cw_ref, pool_ref, fc_ref, out_ref):
    f32 = jnp.float32
    x = x_ref[...]                                               # (8, CHUNK)

    def conv_relu(src, cin, mask_off, w, b):
        # 3x3 SAME conv = 9 lane-rolls, zeroed at image borders via pre-broadcast
        # masks, one matmul against BN-folded weights; bias is a VPU broadcast add.
        taps = []
        for k in range(9):
            oy, ox = k // 3 - 1, k % 3 - 1
            d = oy * W + ox
            rolled = src if d == 0 else pltpu.roll(src, shift=(-d) % CHUNK, axis=1)
            if k == 4:   # centre tap never crosses a border: mask is all ones
                taps.append(rolled)
            else:
                taps.append(rolled * mask_ref[mask_off + k * cin:
                                              mask_off + (k + 1) * cin, :])
        col = jnp.concatenate(taps, axis=0)                      # (9*cin, CHUNK)
        return jnp.maximum(jnp.dot(w, col, preferred_element_type=f32) + b, 0.0)

    # conv1 + folded BN + ReLU : (16,72)@(72,CHUNK)
    h1 = conv_relu(x, CIN_P, 0,
                   cw_ref[ROW_W1:ROW_W1 + C1, 0:K1],
                   cw_ref[ROW_W1:ROW_W1 + C1, K1:K1 + 1])        # (16, CHUNK)
    # conv2 + folded BN + ReLU : (32,144)@(144,CHUNK)
    h2 = conv_relu(h1, C1, K1,
                   cw_ref[ROW_W2:ROW_W2 + C2, 0:K2],
                   cw_ref[ROW_W2:ROW_W2 + C2, K2:K2 + 1])        # (32, CHUNK)
    # TODO(synk): nn.Dropout(0.5) is treated as inference-mode identity (no RNG mask).

    # fused adaptive-avg-pool (4 regions) + per-board piece counts: ONE matmul
    stacked = jnp.concatenate([h2, x], axis=0)                   # (40, CHUNK)
    pooled = jnp.dot(stacked, pool_ref[...],
                     preferred_element_type=f32)                 # (40, POOLCOLS)
    pcT = pooled[C2:C2 + CIN_P, NREG * BPC:(NREG + 1) * BPC]     # (8, BPC) counts

    # fused fc1 feature matrix: rows [reg*32 + c] cnn features, then material rows
    feats = jnp.concatenate(
        [pooled[0:C2, r * BPC:(r + 1) * BPC] for r in range(NREG)] + [pcT],
        axis=0)                                                  # (136, BPC)

    # fc1 (134 -> 256; material_values folded into the weight slab) + ReLU
    fc1 = jnp.maximum(
        jnp.dot(fc_ref[:, 0:FEAT], feats, preferred_element_type=f32)
        + fc_ref[:, FEAT:FEAT + 1], 0.0)                         # (256, BPC)

    # fc2 (256 -> 1) + ReLU as a single (1,256)@(256,BPC) matmul
    pos = jnp.maximum(
        jnp.dot(cw_ref[ROW_FC2:ROW_FC2 + 1, :], fc1, preferred_element_type=f32)
        + scal_ref[2], 0.0)                                      # (1, BPC)

    # end layer (7 -> 1) + sigmoid (material weights * material_values pre-folded)
    mat = jnp.dot(cw_ref[ROW_EWM:ROW_EWM + 1, 0:CIN_P], pcT,
                  preferred_element_type=f32)                    # (1, BPC)
    logit = scal_ref[0] * pos + mat + scal_ref[1]
    out_ref[...] = (1.0 / (1.0 + jnp.exp(-logit))).reshape(1, 1, BPC)


# ----------------------------------------------------------------------------
# Constant operators / parameter folding (wrapper side)
# ----------------------------------------------------------------------------
def _build_mask_slab():
    """(K1+K2, CHUNK) pre-broadcast border masks; rows [72:] are conv2's."""
    tap = np.zeros((9, H, W), np.float32)
    for k in range(9):
        oy, ox = k // 3 - 1, k % 3 - 1
        tap[k, max(0, -oy):H - max(0, oy), max(0, -ox):W - max(0, ox)] = 1.0
    tap = np.tile(tap.reshape(9, 1, PIX_PER_BOARD), (1, BPC, 1)).reshape(9, CHUNK)
    m1 = np.repeat(tap, CIN_P, axis=0)        # (72, CHUNK)  rows k*8  + c
    m2 = np.repeat(tap, C1, axis=0)           # (144, CHUNK) rows k*16 + c
    return jnp.asarray(np.concatenate([m1, m2], axis=0))


def _build_pool_slab():
    """(CHUNK, 5*BPC): cols reg*BPC+b = avg-pool region reg of board b (1/16);
    cols 4*BPC+b = per-board pixel sum (material path)."""
    P = np.zeros((CHUNK, POOLCOLS), np.float32)
    area = (H // 2) * (W // 2)
    for b in range(BPC):
        for i in range(H):
            for j in range(W):
                p = b * PIX_PER_BOARD + i * W + j
                reg = (i // (H // 2)) * 2 + (j // (W // 2))
                P[p, reg * BPC + b] = 1.0 / area
                P[p, NREG * BPC + b] = 1.0
    return jnp.asarray(P)


def _fold_conv(w, bias, gamma, beta, mean, var, cin_pad):
    """(Cout,Cin,3,3) conv + inference BatchNorm -> (Cout, 9*cin_pad) + (Cout,1)."""
    cout, cin = w.shape[0], w.shape[1]
    if cin_pad > cin:
        w = jnp.pad(w, ((0, 0), (0, cin_pad - cin), (0, 0), (0, 0)))
    wt = jnp.transpose(w, (0, 2, 3, 1)).reshape(cout, 9 * cin_pad)  # [o, k*cin_pad + c]
    s = gamma * lax.rsqrt(var + EPS)
    return wt * s[:, None], ((bias - mean) * s + beta)[:, None]


def _build_cw_slab(p):
    w1, b1 = _fold_conv(p["conv1_w"], p["conv1_b"], p["bn1_g"], p["bn1_b"],
                        p["bn1_m"], p["bn1_v"], CIN_P)            # (16,72),(16,1)
    w2, b2 = _fold_conv(p["conv2_w"], p["conv2_b"], p["bn2_g"], p["bn2_b"],
                        p["bn2_m"], p["bn2_v"], C1)               # (32,144),(32,1)
    cw = jnp.zeros((CW_ROWS, CW_COLS), jnp.float32)
    cw = cw.at[ROW_W1:ROW_W1 + C1, 0:K1].set(w1)
    cw = cw.at[ROW_W1:ROW_W1 + C1, K1:K1 + 1].set(b1)
    cw = cw.at[ROW_W2:ROW_W2 + C2, 0:K2].set(w2)
    cw = cw.at[ROW_W2:ROW_W2 + C2, K2:K2 + 1].set(b2)
    cw = cw.at[ROW_FC2, 0:FC1_OUT].set(p["fc2_w"][0])
    cw = cw.at[ROW_EWM, 0:CIN].set(p["end_w"][0, 1:] * p["material_values"])
    return cw


def _build_fc_slab(p):
    mv = p["material_values"]
    wcnn = p["fc1_w"][:, :CNN_FEAT].reshape(FC1_OUT, C2, NREG)        # [o, c, reg]
    wcnn = jnp.transpose(wcnn, (0, 2, 1)).reshape(FC1_OUT, CNN_FEAT)  # [o, reg*32+c]
    wmat = jnp.zeros((FC1_OUT, CIN_P), jnp.float32).at[:, :CIN].set(
        p["fc1_w"][:, CNN_FEAT:] * mv[None, :])
    return jnp.concatenate([wcnn, wmat, p["fc1_b"][:, None]], axis=1)  # (256, 137)


def dual_path_forward(x_nchw, p):
    nb = x_nchw.shape[0]
    nchunks = -(-nb // BPC)
    nb_pad = nchunks * BPC

    # NCHW -> (channels, boards*64): channels on sublanes, pixels lane-dense.
    x2d = jnp.transpose(x_nchw, (1, 0, 2, 3)).reshape(CIN, nb * PIX_PER_BOARD)
    x2d = jnp.pad(x2d.astype(jnp.float32),
                  ((0, CIN_P - CIN), (0, (nb_pad - nb) * PIX_PER_BOARD)))

    scal = jnp.array([p["end_w"][0, 0], p["end_b"][0], p["fc2_b"][0], 0.0],
                     jnp.float32)
    mask_slab = _build_mask_slab()
    cw_slab = _build_cw_slab(p)
    pool_slab = _build_pool_slab()
    fc_slab = _build_fc_slab(p)

    const = lambda shape: pl.BlockSpec(shape, lambda i: (0, 0))
    out = pl.pallas_call(
        dual_path_kernel,
        grid=(nchunks,),
        out_shape=jax.ShapeDtypeStruct((nchunks, 1, BPC), jnp.float32),
        in_specs=[
            pl.BlockSpec(memory_space=pltpu.MemorySpace.SMEM),      # true scalars
            pl.BlockSpec((CIN_P, CHUNK), lambda i: (0, i)),          # board chunk
            const((K1 + K2, CHUNK)),                                 # border masks
            const((CW_ROWS, CW_COLS)),                               # conv/fc2/end slab
            const((CHUNK, POOLCOLS)),                                # pool + count op
            const((FC1_OUT, FEAT + 1)),                              # fc1 weight slab
        ],
        out_specs=pl.BlockSpec((1, 1, BPC), lambda i: (i, 0, 0)),
        compiler_params=pltpu.CompilerParams(
            dimension_semantics=("parallel",)),                      # v7x: 2 TCs
    )(scal, x2d, mask_slab, cw_slab, pool_slab, fc_slab)
    return out.reshape(nb_pad, 1)[:nb]


# ----------------------------------------------------------------------------
# Pure-JAX reference (mirrors the PyTorch forward, inference mode)
# ----------------------------------------------------------------------------
def reference_forward(x, p):
    nb = x.shape[0]

    def bn(h, g, b, m, v):
        return (g[None, :, None, None] * (h - m[None, :, None, None])
                * lax.rsqrt(v[None, :, None, None] + EPS) + b[None, :, None, None])

    h = lax.conv_general_dilated(x, p["conv1_w"], (1, 1), "SAME",
                                 dimension_numbers=("NCHW", "OIHW", "NCHW"))
    h = jnp.maximum(bn(h + p["conv1_b"][None, :, None, None],
                       p["bn1_g"], p["bn1_b"], p["bn1_m"], p["bn1_v"]), 0.0)
    h = lax.conv_general_dilated(h, p["conv2_w"], (1, 1), "SAME",
                                 dimension_numbers=("NCHW", "OIHW", "NCHW"))
    h = jnp.maximum(bn(h + p["conv2_b"][None, :, None, None],
                       p["bn2_g"], p["bn2_b"], p["bn2_m"], p["bn2_v"]), 0.0)
    pooled = h.reshape(nb, C2, 2, H // 2, 2, W // 2).mean(axis=(3, 5))
    cnn_out = pooled.reshape(nb, CNN_FEAT)
    material = x.sum(axis=(2, 3)) * p["material_values"][None, :]
    combined = jnp.concatenate([cnn_out, material], axis=1)
    h1 = jnp.maximum(combined @ p["fc1_w"].T + p["fc1_b"], 0.0)
    pos = jnp.maximum(h1 @ p["fc2_w"].T + p["fc2_b"], 0.0)
    final = jnp.concatenate([pos, material], axis=1)
    return 1.0 / (1.0 + jnp.exp(-(final @ p["end_w"].T + p["end_b"])))


if __name__ == "__main__":
    key = jax.random.PRNGKey(0)
    ks = jax.random.split(key, 20)
    p = {
        "conv1_w": 0.1 * jax.random.normal(ks[0], (C1, CIN, 3, 3), jnp.float32),
        "conv1_b": 0.1 * jax.random.normal(ks[1], (C1,), jnp.float32),
        "bn1_g": 1.0 + 0.1 * jax.random.normal(ks[2], (C1,), jnp.float32),
        "bn1_b": 0.1 * jax.random.normal(ks[3], (C1,), jnp.float32),
        "bn1_m": 0.1 * jax.random.normal(ks[4], (C1,), jnp.float32),
        "bn1_v": 1.0 + 0.5 * jax.random.uniform(ks[5], (C1,), jnp.float32),
        "conv2_w": 0.1 * jax.random.normal(ks[6], (C2, C1, 3, 3), jnp.float32),
        "conv2_b": 0.1 * jax.random.normal(ks[7], (C2,), jnp.float32),
        "bn2_g": 1.0 + 0.1 * jax.random.normal(ks[8], (C2,), jnp.float32),
        "bn2_b": 0.1 * jax.random.normal(ks[9], (C2,), jnp.float32),
        "bn2_m": 0.1 * jax.random.normal(ks[10], (C2,), jnp.float32),
        "bn2_v": 1.0 + 0.5 * jax.random.uniform(ks[11], (C2,), jnp.float32),
        "material_values": jax.random.normal(ks[12], (CIN,), jnp.float32),
        "fc1_w": 0.05 * jax.random.normal(ks[13], (FC1_OUT, FC1_IN), jnp.float32),
        "fc1_b": 0.05 * jax.random.normal(ks[14], (FC1_OUT,), jnp.float32),
        "fc2_w": 0.05 * jax.random.normal(ks[15], (1, FC1_OUT), jnp.float32),
        "fc2_b": 0.05 * jax.random.normal(ks[16], (1,), jnp.float32),
        "end_w": 0.5 * jax.random.normal(ks[17], (1, 7), jnp.float32),
        "end_b": 0.1 * jax.random.normal(ks[18], (1,), jnp.float32),
    }
    x = jax.random.uniform(ks[19], (2, CIN, H, W), jnp.float32)   # NCHW like PyTorch

    out = jax.block_until_ready(dual_path_forward(x, p))
    ref = jax.block_until_ready(reference_forward(x, p))
    np.testing.assert_allclose(np.asarray(out), np.asarray(ref), rtol=1e-4, atol=1e-5)
    print("KERNEL_OK")
</pallas_src>

<mosaic_0001>
module attributes {stable_mosaic.version = 11 : i64} {
  func.func @dual_path_kernel(%arg0: i32, %arg1: memref<4xf32, #tpu.memory_space<smem>>, %arg2: memref<8x128xf32, #tpu.memory_space<vmem>>, %arg3: memref<216x128xf32, #tpu.memory_space<vmem>>, %arg4: memref<56x256xf32, #tpu.memory_space<vmem>>, %arg5: memref<128x10xf32, #tpu.memory_space<vmem>>, %arg6: memref<256x137xf32, #tpu.memory_space<vmem>>, %arg7: memref<1x1x2xf32, #tpu.memory_space<vmem>>) attributes {dimension_semantics = [#tpu.dimension_semantics<parallel>], iteration_bounds = array<i64: 1>, scalar_prefetch = 0 : i64, scratch_operands = 0 : i64, tpu.core_type = #tpu.core_type<tc>, window_params = [{transform_indices = @transform_0, window_bounds = array<i64: 4>}, {transform_indices = @transform_1, window_bounds = array<i64: 8, 128>}, {pipeline_mode = #tpu.pipeline_mode<synchronous>, transform_indices = @transform_2, window_bounds = array<i64: 216, 128>}, {pipeline_mode = #tpu.pipeline_mode<synchronous>, transform_indices = @transform_3, window_bounds = array<i64: 56, 256>}, {pipeline_mode = #tpu.pipeline_mode<synchronous>, transform_indices = @transform_4, window_bounds = array<i64: 128, 10>}, {pipeline_mode = #tpu.pipeline_mode<synchronous>, transform_indices = @transform_5, window_bounds = array<i64: 256, 137>}, {transform_indices = @transform_6, window_bounds = array<i64: 1, 1, 2>}]} {
    %c0 = arith.constant 0 : index
    %c0_0 = arith.constant 0 : index
    %0 = vector.load %arg2[%c0, %c0_0] : memref<8x128xf32, #tpu.memory_space<vmem>>, vector<8x128xf32>
    %c0_1 = arith.constant 0 : index
    %c0_2 = arith.constant 0 : index
    %1 = vector.load %arg4[%c0_1, %c0_2] : memref<56x256xf32, #tpu.memory_space<vmem>>, vector<16x72xf32>
    %c0_3 = arith.constant 0 : index
    %c72 = arith.constant 72 : index
    %2 = vector.load %arg4[%c0_3, %c72] : memref<56x256xf32, #tpu.memory_space<vmem>>, vector<16x1xf32>
    %c9_i32 = arith.constant 9 : i32
    %3 = tpu.dynamic_rotate %0 by %c9_i32 dim 1 : vector<8x128xf32>, i32 -> vector<8x128xf32>
    %c0_4 = arith.constant 0 : index
    %c0_5 = arith.constant 0 : index
    %4 = vector.load %arg3[%c0_4, %c0_5] : memref<216x128xf32, #tpu.memory_space<vmem>>, vector<8x128xf32>
    %5 = arith.mulf %3, %4 : vector<8x128xf32>
    %c8_i32 = arith.constant 8 : i32
    %6 = tpu.dynamic_rotate %0 by %c8_i32 dim 1 : vector<8x128xf32>, i32 -> vector<8x128xf32>
    %c8 = arith.constant 8 : index
    %c0_6 = arith.constant 0 : index
    %7 = vector.load %arg3[%c8, %c0_6] : memref<216x128xf32, #tpu.memory_space<vmem>>, vector<8x128xf32>
    %8 = arith.mulf %6, %7 : vector<8x128xf32>
    %c7_i32 = arith.constant 7 : i32
    %9 = tpu.dynamic_rotate %0 by %c7_i32 dim 1 : vector<8x128xf32>, i32 -> vector<8x128xf32>
    %c16 = arith.constant 16 : index
    %c0_7 = arith.constant 0 : index
    %10 = vector.load %arg3[%c16, %c0_7] : memref<216x128xf32, #tpu.memory_space<vmem>>, vector<8x128xf32>
    %11 = arith.mulf %9, %10 : vector<8x128xf32>
    %c1_i32 = arith.constant 1 : i32
    %12 = tpu.dynamic_rotate %0 by %c1_i32 dim 1 : vector<8x128xf32>, i32 -> vector<8x128xf32>
    %c24 = arith.constant 24 : index
    %c0_8 = arith.constant 0 : index
    %13 = vector.load %arg3[%c24, %c0_8] : memref<216x128xf32, #tpu.memory_space<vmem>>, vector<8x128xf32>
    %14 = arith.mulf %12, %13 : vector<8x128xf32>
    %c127_i32 = arith.constant 127 : i32
    %15 = tpu.dynamic_rotate %0 by %c127_i32 dim 1 : vector<8x128xf32>, i32 -> vector<8x128xf32>
    %c40 = arith.constant 40 : index
    %c0_9 = arith.constant 0 : index
    %16 = vector.load %arg3[%c40, %c0_9] : memref<216x128xf32, #tpu.memory_space<vmem>>, vector<8x128xf32>
    %17 = arith.mulf %15, %16 : vector<8x128xf32>
    %c121_i32 = arith.constant 121 : i32
    %18 = tpu.dynamic_rotate %0 by %c121_i32 dim 1 : vector<8x128xf32>, i32 -> vector<8x128xf32>
    %c48 = arith.constant 48 : index
    %c0_10 = arith.constant 0 : index
    %19 = vector.load %arg3[%c48, %c0_10] : memref<216x128xf32, #tpu.memory_space<vmem>>, vector<8x128xf32>
    %20 = arith.mulf %18, %19 : vector<8x128xf32>
    %c120_i32 = arith.constant 120 : i32
    %21 = tpu.dynamic_rotate %0 by %c120_i32 dim 1 : vector<8x128xf32>, i32 -> vector<8x128xf32>
    %c56 = arith.constant 56 : index
    %c0_11 = arith.constant 0 : index
    %22 = vector.load %arg3[%c56, %c0_11] : memref<216x128xf32, #tpu.memory_space<vmem>>, vector<8x128xf32>
    %23 = arith.mulf %21, %22 : vector<8x128xf32>
    %c119_i32 = arith.constant 119 : i32
    %24 = tpu.dynamic_rotate %0 by %c119_i32 dim 1 : vector<8x128xf32>, i32 -> vector<8x128xf32>
    %c64 = arith.constant 64 : index
    %c0_12 = arith.constant 0 : index
    %25 = vector.load %arg3[%c64, %c0_12] : memref<216x128xf32, #tpu.memory_space<vmem>>, vector<8x128xf32>
    %26 = arith.mulf %24, %25 : vector<8x128xf32>
    %27 = tpu.concatenate %5, %8, %11, %14, %0, %17, %20, %23, %26 in 0 : vector<8x128xf32>, vector<8x128xf32>, vector<8x128xf32>, vector<8x128xf32>, vector<8x128xf32>, vector<8x128xf32>, vector<8x128xf32>, vector<8x128xf32>, vector<8x128xf32> -> vector<72x128xf32>
    %cst = arith.constant dense<0.000000e+00> : vector<16x128xf32>
    %28 = tpu.matmul %1, %27, %cst {dimension_numbers = #tpu.dot_dimension_numbers<[1], [0], [0], [1], [0, 0, 1, 1], [], []>} : vector<16x72xf32>, vector<72x128xf32>, vector<16x128xf32> -> vector<16x128xf32>
    %29 = vector.broadcast %2 : vector<16x1xf32> to vector<16x128xf32>
    %30 = arith.addf %28, %29 : vector<16x128xf32>
    %cst_13 = arith.constant 0.000000e+00 : f32
    %31 = vector.broadcast %cst_13 : f32 to vector<16x128xf32>
    %32 = arith.maximumf %30, %31 : vector<16x128xf32>
    %c16_14 = arith.constant 16 : index
    %c0_15 = arith.constant 0 : index
    %33 = vector.load %arg4[%c16_14, %c0_15] : memref<56x256xf32, #tpu.memory_space<vmem>>, vector<32x144xf32>
    %c16_16 = arith.constant 16 : index
    %c144 = arith.constant 144 : index
    %34 = vector.load %arg4[%c16_16, %c144] : memref<56x256xf32, #tpu.memory_space<vmem>>, vector<32x1xf32>
    %c9_i32_17 = arith.constant 9 : i32
    %35 = tpu.dynamic_rotate %32 by %c9_i32_17 dim 1 : vector<16x128xf32>, i32 -> vector<16x128xf32>
    %c72_18 = arith.constant 72 : index
    %c0_19 = arith.constant 0 : index
    %36 = vector.load %arg3[%c72_18, %c0_19] : memref<216x128xf32, #tpu.memory_space<vmem>>, vector<16x128xf32>
    %37 = arith.mulf %35, %36 : vector<16x128xf32>
    %c8_i32_20 = arith.constant 8 : i32
    %38 = tpu.dynamic_rotate %32 by %c8_i32_20 dim 1 : vector<16x128xf32>, i32 -> vector<16x128xf32>
    %c88 = arith.constant 88 : index
    %c0_21 = arith.constant 0 : index
    %39 = vector.load %arg3[%c88, %c0_21] : memref<216x128xf32, #tpu.memory_space<vmem>>, vector<16x128xf32>
    %40 = arith.mulf %38, %39 : vector<16x128xf32>
    %c7_i32_22 = arith.constant 7 : i32
    %41 = tpu.dynamic_rotate %32 by %c7_i32_22 dim 1 : vector<16x128xf32>, i32 -> vector<16x128xf32>
    %c104 = arith.constant 104 : index
    %c0_23 = arith.constant 0 : index
    %42 = vector.load %arg3[%c104, %c0_23] : memref<216x128xf32, #tpu.memory_space<vmem>>, vector<16x128xf32>
    %43 = arith.mulf %41, %42 : vector<16x128xf32>
    %c1_i32_24 = arith.constant 1 : i32
    %44 = tpu.dynamic_rotate %32 by %c1_i32_24 dim 1 : vector<16x128xf32>, i32 -> vector<16x128xf32>
    %c120 = arith.constant 120 : index
    %c0_25 = arith.constant 0 : index
    %45 = vector.load %arg3[%c120, %c0_25] : memref<216x128xf32, #tpu.memory_space<vmem>>, vector<16x128xf32>
    %46 = arith.mulf %44, %45 : vector<16x128xf32>
    %c127_i32_26 = arith.constant 127 : i32
    %47 = tpu.dynamic_rotate %32 by %c127_i32_26 dim 1 : vector<16x128xf32>, i32 -> vector<16x128xf32>
    %c152 = arith.constant 152 : index
    %c0_27 = arith.constant 0 : index
    %48 = vector.load %arg3[%c152, %c0_27] : memref<216x128xf32, #tpu.memory_space<vmem>>, vector<16x128xf32>
    %49 = arith.mulf %47, %48 : vector<16x128xf32>
    %c121_i32_28 = arith.constant 121 : i32
    %50 = tpu.dynamic_rotate %32 by %c121_i32_28 dim 1 : vector<16x128xf32>, i32 -> vector<16x128xf32>
    %c168 = arith.constant 168 : index
    %c0_29 = arith.constant 0 : index
    %51 = vector.load %arg3[%c168, %c0_29] : memref<216x128xf32, #tpu.memory_space<vmem>>, vector<16x128xf32>
    %52 = arith.mulf %50, %51 : vector<16x128xf32>
    %c120_i32_30 = arith.constant 120 : i32
    %53 = tpu.dynamic_rotate %32 by %c120_i32_30 dim 1 : vector<16x128xf32>, i32 -> vector<16x128xf32>
    %c184 = arith.constant 184 : index
    %c0_31 = arith.constant 0 : index
    %54 = vector.load %arg3[%c184, %c0_31] : memref<216x128xf32, #tpu.memory_space<vmem>>, vector<16x128xf32>
    %55 = arith.mulf %53, %54 : vector<16x128xf32>
    %c119_i32_32 = arith.constant 119 : i32
    %56 = tpu.dynamic_rotate %32 by %c119_i32_32 dim 1 : vector<16x128xf32>, i32 -> vector<16x128xf32>
    %c200 = arith.constant 200 : index
    %c0_33 = arith.constant 0 : index
    %57 = vector.load %arg3[%c200, %c0_33] : memref<216x128xf32, #tpu.memory_space<vmem>>, vector<16x128xf32>
    %58 = arith.mulf %56, %57 : vector<16x128xf32>
    %59 = tpu.concatenate %37, %40, %43, %46, %32, %49, %52, %55, %58 in 0 : vector<16x128xf32>, vector<16x128xf32>, vector<16x128xf32>, vector<16x128xf32>, vector<16x128xf32>, vector<16x128xf32>, vector<16x128xf32>, vector<16x128xf32>, vector<16x128xf32> -> vector<144x128xf32>
    %cst_34 = arith.constant dense<0.000000e+00> : vector<32x128xf32>
    %60 = tpu.matmul %33, %59, %cst_34 {dimension_numbers = #tpu.dot_dimension_numbers<[1], [0], [0], [1], [0, 0, 1, 1], [], []>} : vector<32x144xf32>, vector<144x128xf32>, vector<32x128xf32> -> vector<32x128xf32>
    %61 = vector.broadcast %34 : vector<32x1xf32> to vector<32x128xf32>
    %62 = arith.addf %60, %61 : vector<32x128xf32>
    %cst_35 = arith.constant 0.000000e+00 : f32
    %63 = vector.broadcast %cst_35 : f32 to vector<32x128xf32>
    %64 = arith.maximumf %62, %63 : vector<32x128xf32>
    %65 = tpu.concatenate %64, %0 in 0 : vector<32x128xf32>, vector<8x128xf32> -> vector<40x128xf32>
    %c0_36 = arith.constant 0 : index
    %c0_37 = arith.constant 0 : index
    %66 = vector.load %arg5[%c0_36, %c0_37] : memref<128x10xf32, #tpu.memory_space<vmem>>, vector<128x10xf32>
    %cst_38 = arith.constant dense<0.000000e+00> : vector<40x10xf32>
    %67 = tpu.matmul %65, %66, %cst_38 {dimension_numbers = #tpu.dot_dimension_numbers<[1], [0], [0], [1], [0, 0, 1, 1], [], []>} : vector<40x128xf32>, vector<128x10xf32>, vector<40x10xf32> -> vector<40x10xf32>
    %68 = vector.extract_strided_slice %67 {offsets = [32, 8], sizes = [8, 2], strides = [1, 1]} : vector<40x10xf32> to vector<8x2xf32>
    %69 = vector.extract_strided_slice %67 {offsets = [0, 0], sizes = [32, 2], strides = [1, 1]} : vector<40x10xf32> to vector<32x2xf32>
    %70 = vector.extract_strided_slice %67 {offsets = [0, 2], sizes = [32, 2], strides = [1, 1]} : vector<40x10xf32> to vector<32x2xf32>
    %71 = vector.extract_strided_slice %67 {offsets = [0, 4], sizes = [32, 2], strides = [1, 1]} : vector<40x10xf32> to vector<32x2xf32>
    %72 = vector.extract_strided_slice %67 {offsets = [0, 6], sizes = [32, 2], strides = [1, 1]} : vector<40x10xf32> to vector<32x2xf32>
    %73 = tpu.concatenate %69, %70, %71, %72, %68 in 0 : vector<32x2xf32>, vector<32x2xf32>, vector<32x2xf32>, vector<32x2xf32>, vector<8x2xf32> -> vector<136x2xf32>
    %c0_39 = arith.constant 0 : index
    %c0_40 = arith.constant 0 : index
    %74 = vector.load %arg6[%c0_39, %c0_40] : memref<256x137xf32, #tpu.memory_space<vmem>>, vector<256x136xf32>
    %cst_41 = arith.constant dense<0.000000e+00> : vector<256x2xf32>
    %75 = tpu.matmul %74, %73, %cst_41 {dimension_numbers = #tpu.dot_dimension_numbers<[1], [0], [0], [1], [0, 0, 1, 1], [], []>} : vector<256x136xf32>, vector<136x2xf32>, vector<256x2xf32> -> vector<256x2xf32>
    %c0_42 = arith.constant 0 : index
    %c136 = arith.constant 136 : index
    %76 = vector.load %arg6[%c0_42, %c136] : memref<256x137xf32, #tpu.memory_space<vmem>>, vector<256x1xf32>
    %77 = vector.broadcast %76 : vector<256x1xf32> to vector<256x2xf32>
    %78 = arith.addf %75, %77 : vector<256x2xf32>
    %cst_43 = arith.constant 0.000000e+00 : f32
    %79 = vector.broadcast %cst_43 : f32 to vector<256x2xf32>
    %80 = arith.maximumf %78, %79 : vector<256x2xf32>
    %c48_44 = arith.constant 48 : index
    %c0_45 = arith.constant 0 : index
    %81 = vector.load %arg4[%c48_44, %c0_45] : memref<56x256xf32, #tpu.memory_space<vmem>>, vector<1x256xf32>
    %cst_46 = arith.constant dense<0.000000e+00> : vector<1x2xf32>
    %82 = tpu.matmul %81, %80, %cst_46 {dimension_numbers = #tpu.dot_dimension_numbers<[1], [0], [0], [1], [0, 0, 1, 1], [], []>} : vector<1x256xf32>, vector<256x2xf32>, vector<1x2xf32> -> vector<1x2xf32>
    %c2 = arith.constant 2 : index
    %83 = memref.load %arg1[%c2] : memref<4xf32, #tpu.memory_space<smem>>
    %84 = vector.broadcast %83 : f32 to vector<1x2xf32>
    %85 = arith.addf %82, %84 : vector<1x2xf32>
    %cst_47 = arith.constant 0.000000e+00 : f32
    %86 = vector.broadcast %cst_47 : f32 to vector<1x2xf32>
    %87 = arith.maximumf %85, %86 : vector<1x2xf32>
    %c49 = arith.constant 49 : index
    %c0_48 = arith.constant 0 : index
    %88 = vector.load %arg4[%c49, %c0_48] : memref<56x256xf32, #tpu.memory_space<vmem>>, vector<1x8xf32>
    %cst_49 = arith.constant dense<0.000000e+00> : vector<1x2xf32>
    %89 = tpu.matmul %88, %68, %cst_49 {dimension_numbers = #tpu.dot_dimension_numbers<[1], [0], [0], [1], [0, 0, 1, 1], [], []>} : vector<1x8xf32>, vector<8x2xf32>, vector<1x2xf32> -> vector<1x2xf32>
    %c0_50 = arith.constant 0 : index
    %90 = memref.load %arg1[%c0_50] : memref<4xf32, #tpu.memory_space<smem>>
    %91 = vector.broadcast %90 : f32 to vector<1x2xf32>
    %92 = arith.mulf %91, %87 : vector<1x2xf32>
    %93 = arith.addf %92, %89 : vector<1x2xf32>
    %c1 = arith.constant 1 : index
    %94 = memref.load %arg1[%c1] : memref<4xf32, #tpu.memory_space<smem>>
    %95 = vector.broadcast %94 : f32 to vector<1x2xf32>
    %96 = arith.addf %93, %95 : vector<1x2xf32>
    %cst_51 = arith.constant 0.000000e+00 : f32
    %97 = vector.broadcast %cst_51 : f32 to vector<1x2xf32>
    %98 = arith.subf %97, %96 : vector<1x2xf32>
    %99 = math.exp %98 : vector<1x2xf32>
    %cst_52 = arith.constant 1.000000e+00 : f32
    %100 = vector.broadcast %cst_52 : f32 to vector<1x2xf32>
    %101 = arith.addf %100, %99 : vector<1x2xf32>
    %cst_53 = arith.constant 1.000000e+00 : f32
    %102 = vector.broadcast %cst_53 : f32 to vector<1x2xf32>
    %103 = arith.divf %102, %101 : vector<1x2xf32>
    %104 = vector.shape_cast %103 : vector<1x2xf32> to vector<1x1x2xf32>
    %c0_54 = arith.constant 0 : index
    %c0_55 = arith.constant 0 : index
    %c0_56 = arith.constant 0 : index
    %105 = vector.load %arg7[%c0_54, %c0_55, %c0_56] : memref<1x1x2xf32, #tpu.memory_space<vmem>>, vector<1x1x2xf32>
    tpu.vector_store %arg7[%c0_54, %c0_55, %c0_56], %104 {strides = array<i32>} : memref<1x1x2xf32, #tpu.memory_space<vmem>>, vector<1x1x2xf32>,
    return
  }
  func.func @transform_0(%arg0: i32) -> i32 {
    %c0_i32 = arith.constant 0 : i32
    %c0_i32_0 = arith.constant 0 : i32
    return %c0_i32 : i32
  }
  func.func @transform_1(%arg0: i32) -> (i32, i32) {
    %c0_i32 = arith.constant 0 : i32
    %c0_i32_0 = arith.constant 0 : i32
    return %c0_i32, %arg0 : i32, i32
  }
  func.func @transform_2(%arg0: i32) -> (i32, i32) {
    %c0_i32 = arith.constant 0 : i32
    %c0_i32_0 = arith.constant 0 : i32
    %c0_i32_1 = arith.constant 0 : i32
    return %c0_i32, %c0_i32_0 : i32, i32
  }
  func.func @transform_3(%arg0: i32) -> (i32, i32) {
    %c0_i32 = arith.constant 0 : i32
    %c0_i32_0 = arith.constant 0 : i32
    %c0_i32_1 = arith.constant 0 : i32
    return %c0_i32, %c0_i32_0 : i32, i32
  }
  func.func @transform_4(%arg0: i32) -> (i32, i32) {
    %c0_i32 = arith.constant 0 : i32
    %c0_i32_0 = arith.constant 0 : i32
    %c0_i32_1 = arith.constant 0 : i32
    return %c0_i32, %c0_i32_0 : i32, i32
  }
  func.func @transform_5(%arg0: i32) -> (i32, i32) {
    %c0_i32 = arith.constant 0 : i32
    %c0_i32_0 = arith.constant 0 : i32
    %c0_i32_1 = arith.constant 0 : i32
    return %c0_i32, %c0_i32_0 : i32, i32
  }
  func.func @transform_6(%arg0: i32) -> (i32, i32, i32) {
    %c0_i32 = arith.constant 0 : i32
    %c0_i32_0 = arith.constant 0 : i32
    %c0_i32_1 = arith.constant 0 : i32
    return %arg0, %c0_i32, %c0_i32_0 : i32, i32, i32
  }
}

</mosaic_0001>

<llo_original>
// kernel: tpu_custom_call.1
$region0: #{tpu_custom_call.1}
  #allocation0 [shape = 'u32[]', space=smem, size = 0x4, offset = 0x4, fixed_abs, tag = 'smem constant byte address 0x4 - core index']
  #allocation1 [shape = 'u32[144,128]{1,0:T(1,128)}', space=vmem, size = 0x12000, scoped, tag = 'internal scratch']
  %s0 = inlined_call_operand.vmem [shape: f32[4], index: 0, kind: input, shape index: {}]
  %s1 = inlined_call_operand.vmem [shape: f32[8,128], index: 1, kind: input, shape index: {}]
  %s2 = inlined_call_operand.vmem [shape: f32[216,128], index: 2, kind: input, shape index: {}]
  %s3 = inlined_call_operand.vmem [shape: f32[56,256], index: 3, kind: input, shape index: {}]
  %s4 = inlined_call_operand.vmem [shape: f32[128,10], index: 4, kind: input, shape index: {}]
  %s5 = inlined_call_operand.vmem [shape: f32[256,137], index: 5, kind: input, shape index: {}]
  %s6 = inlined_call_operand.hbm [shape: f32[1,1,2], index: 6, kind: output, shape index: {}]
  %s7 = sld [smem:[#allocation0]]
  $region38: #{tpu_custom_call.1} parent=0
    _
  %s9 = ssub.s32 1, %s7
  %s10 = scalar_select 0, %s9, %s7
  $region1: #{tpu_custom_call.1} parent=0
    #allocation2 [shape = 'u8[512]{0}', space=smem, size = 0x200, scoped, tag = 'input window, operand 0, single buffered']
    #allocation3 [shape = 's32[1]{0}', space=sflag, size = 0x4, scoped, tag = 'scoped memory for tpu_custom_call.1']
    #allocation4 [shape = 's32[1]{0}', space=sflag, size = 0x4, scoped, tag = 'scoped memory for tpu_custom_call.1']
    #allocation5 [shape = 'u8[512]{0}', space=vmem, size = 0x400, scoped, tag = 'output window, operand 0, single buffered']
    %11 = vsyncpa [#allocation4], 0
    %12 = vsyncpa [#allocation3], 0
    // Predicated region
    $region2: #{tpu_custom_call.1} parent=1 // pred_check
      _
    $region3: #{tpu_custom_call.1} parent=1 // pred_check_branch
      %14 = sbr.rel (0) target = $region5
    $region4: #{tpu_custom_call.1} parent=1 // pred_region
      %s16 = ssub.s32 16, 16
      %17 = vsyncadd [#allocation4], %s16
      %s19 = sshll.u32 %s0, 4
      %s20 = int_to_ptr.vmem [resolvable:$true] %s19
      %22 = dma.vmem_to_smem %s20, 16, [#allocation2], [#allocation4]
    $region5: #{tpu_custom_call.1} parent=1 // pred_fallthru
      _
    // Predicated region
    $region6: #{tpu_custom_call.1} parent=1 // pred_check
      _
    $region7: #{tpu_custom_call.1} parent=1 // pred_check_branch
      %24 = sbr.rel (0) target = $region9
    $region8: #{tpu_custom_call.1} parent=1 // pred_region
      _
    $region9: #{tpu_custom_call.1} parent=1 // pred_fallthru
      _
    // Predicated region
    $region10: #{tpu_custom_call.1} parent=1 // pred_check
      _
    $region11: #{tpu_custom_call.1} parent=1 // pred_check_branch
      %26 = sbr.rel (0) target = $region13
    $region12: #{tpu_custom_call.1} parent=1 // pred_region
      _
    $region13: #{tpu_custom_call.1} parent=1 // pred_fallthru
      _
    // Predicated region
    $region14: #{tpu_custom_call.1} parent=1 // pred_check
      _
    $region15: #{tpu_custom_call.1} parent=1 // pred_check_branch
      %28 = sbr.rel (0) target = $region17
    $region16: #{tpu_custom_call.1} parent=1 // pred_region
      _
    $region17: #{tpu_custom_call.1} parent=1 // pred_fallthru
      _
    // Predicated region
    $region18: #{tpu_custom_call.1} parent=1 // pred_check
      _
    $region19: #{tpu_custom_call.1} parent=1 // pred_check_branch
      %30 = sbr.rel (0) target = $region21
    $region20: #{tpu_custom_call.1} parent=1 // pred_region
      _
    $region21: #{tpu_custom_call.1} parent=1 // pred_fallthru
      _
    // Predicated region
    $region22: #{tpu_custom_call.1} parent=1 // pred_check
      _
    $region23: #{tpu_custom_call.1} parent=1 // pred_check_branch
      %32 = sbr.rel (0) target = $region25
    $region24: #{tpu_custom_call.1} parent=1 // pred_region
      _
    $region25: #{tpu_custom_call.1} parent=1 // pred_fallthru
      _
    // Predicated region
    $region26: #{tpu_custom_call.1} parent=1 // pred_check
      _
    $region27: #{tpu_custom_call.1} parent=1 // pred_check_branch
      %34 = sbr.rel (0) target = $region29
    $region28: #{tpu_custom_call.1} parent=1 // pred_region
      %35 = dma.done [#allocation4], 16
    $region29: #{tpu_custom_call.1} parent=1 // pred_fallthru
      _
    %36 = sfence
    %v37 = vld [vmem:[%s1] sm:$0xff]
    %v38 = vld [vmem:[%s3] sm:$0xff]
    %v39 = vld [vmem:[%s3 + $0x10] sm:$0xff]
    %40 = vrot.lane.b32.xlu0 %v37, 9
    %v41 = vpop.permute.xlu0 %40
    %v42 = vld [vmem:[%s2] sm:$0xff]
    %v43 = vmul.f32 %v41, %v42
    %44 = vrot.lane.b32.xlu0 %v37, 8
    %v45 = vpop.permute.xlu0 %44
    %v46 = vld [vmem:[%s2 + $0x8] sm:$0xff]
    %v47 = vmul.f32 %v45, %v46
    %48 = vrot.lane.b32.xlu0 %v37, 7
    %v49 = vpop.permute.xlu0 %48
    %v50 = vld [vmem:[%s2 + $0x10] sm:$0xff]
    %v51 = vmul.f32 %v49, %v50
    %52 = vrot.lane.b32.xlu0 %v37, 1
    %v53 = vpop.permute.xlu0 %52
    %v54 = vld [vmem:[%s2 + $0x18] sm:$0xff]
    %v55 = vmul.f32 %v53, %v54
    %56 = vrot.lane.b32.xlu0 %v37, 127
    %v57 = vpop.permute.xlu0 %56
    %v58 = vld [vmem:[%s2 + $0x28] sm:$0xff]
    %v59 = vmul.f32 %v57, %v58
    %60 = vrot.lane.b32.xlu0 %v37, 121
    %v61 = vpop.permute.xlu0 %60
    %v62 = vld [vmem:[%s2 + $0x30] sm:$0xff]
    %v63 = vmul.f32 %v61, %v62
    %64 = vrot.lane.b32.xlu0 %v37, 120
    %v65 = vpop.permute.xlu0 %64
    %v66 = vld [vmem:[%s2 + $0x38] sm:$0xff]
    %v67 = vmul.f32 %v65, %v66
    %68 = vrot.lane.b32.xlu0 %v37, 119
    %v69 = vpop.permute.xlu0 %68
    %v70 = vld [vmem:[%s2 + $0x40] sm:$0xff]
    %v71 = vmul.f32 %v69, %v70
    %73 = vset.pattern.permute.xlu0 72
    %74 = vperm.xlu0 %73, %v38
    %v75 = vpop.permute.xlu0 %74
    %78 = vset.pattern.permute.xlu0 72
    %79 = vperm.xlu0 %78, %v39
    %v80 = vpop.permute.xlu0 %79
    %vm82 = vcmask 588800
    %v83 = vsel %vm82, %v38, 0
    %v85 = vsel %vm82, %v39, 0
    %87 = vmatprep.subr.mxu0 0.0
    %88 = vmatpush1.msra.mxu0 %v43
    %89 = vmatprep.subr.mxu0 0.0
    %90 = vmatpush1.msra.mxu0 %v47
    %91 = vmatprep.subr.mxu0 0.0
    %92 = vmatpush1.msra.mxu0 %v51
    %93 = vmatprep.subr.mxu0 0.0
    %94 = vmatpush1.msra.mxu0 %v55
    %95 = vmatprep.subr.mxu0 0.0
    %96 = vmatpush1.msra.mxu0 %v37
    %97 = vmatprep.subr.mxu0 0.0
    %98 = vmatpush1.msra.mxu0 %v59
    %99 = vmatprep.subr.mxu0 0.0
    %100 = vmatpush1.msra.mxu0 %v63
    %101 = vmatprep.subr.mxu0 0.0
    %102 = vmatpush1.msra.mxu0 %v67
    %103 = vmatprep.subr.mxu0 0.0
    %104 = vmatpush1.msra.mxu0 %v71
    %105 = vmatprep.subr.mxu0 0.0
    %106 = vmatpush1.msra.mxu0 0.0
    %107 = vmatprep.subr.mxu0 0.0
    %108 = vmatpush1.msra.mxu0 0.0
    %109 = vmatprep.subr.mxu0 0.0
    %110 = vmatpush1.msra.mxu0 0.0
    %111 = vmatprep.subr.mxu0 0.0
    %112 = vmatpush1.msra.mxu0 0.0
    %113 = vmatprep.subr.mxu0 0.0
    %114 = vmatpush1.msra.mxu0 0.0
    %115 = vmatprep.subr.mxu0 0.0
    %116 = vmatpush1.msra.mxu0 0.0
    %117 = vmatprep.subr.mxu0 0.0
    %118 = vmatpush1.msra.mxu0 0.0
    %119 = vmatprep.subr.mxu0 0.0
    %120 = vmatpush1.msra.mxu0 0.0
    %121 = vmatprep.subr.mxu0 0.0
    %122 = vmatpush1.msra.mxu0 0.0
    %123 = vmatprep.subr.mxu0 0.0
    %124 = vmatpush1.msra.mxu0 0.0
    %125 = vmatprep.subr.mxu0 0.0
    %126 = vmatpush1.msra.mxu0 0.0
    %127 = vmatprep.subr.mxu0 0.0
    %128 = vmatpush1.msra.mxu0 0.0
    %129 = vmatprep.subr.mxu0 0.0
    %130 = vmatpush1.msra.mxu0 0.0
    %131 = vmatprep.subr.mxu0 0.0
    %132 = vmatpush1.msra.mxu0 0.0
    %133 = vmatprep.subr.mxu0 0.0
    %134 = vmatpush1.msra.mxu0 0.0
    %135 = vmatprep.subr.mxu0 0.0
    %136 = vmatpush1.msra.mxu0 0.0
    %137 = vmatprep.subr.mxu0 0.0
    %138 = vmatpush1.msra.mxu0 0.0
    %139 = vmatprep.subr.mxu0 0.0
    %140 = vmatpush1.msra.mxu0 0.0
    %141 = vmatprep.subr.mxu0 0.0
    %142 = vmatpush1.msra.mxu0 0.0
    %143 = vmatprep.subr.mxu0 0.0
    %144 = vmatpush1.msra.mxu0 0.0
    %145 = vmatprep.subr.mxu0 0.0
    %146 = vmatpush1.msra.mxu0 0.0
    %147 = vmatprep.subr.mxu0 0.0
    %148 = vmatpush1.msra.mxu0 0.0
    %149 = vmatprep.subr.mxu0 0.0
    %150 = vmatpush1.msra.mxu0 0.0
    %151 = vmatprep.mubr.f32.mxu0 0.0
    %152 = vmatmul.mubr.f32.gmra.mrb[0].mxu0 %v83
    %v153 = vpop.f32.mrb[0].mxu0
    %v154 = vadd.f32 %v75, %v153
    %v155 = vpop.f32.mrb[0].mxu0
    %156 = vmatprep.mubr.f32.mxu0 0.0
    %157 = vmatmul.mubr.f32.gmra.mrb[0].mxu0 %v85
    %v158 = vpop.f32.mrb[0].mxu0
    %v159 = vadd.f32 %v80, %v158
    %v160 = vpop.f32.mrb[0].mxu0
    %161 = vdwg.mxu0
    %v162 = vmax.f32 %v154, 0.0
    %v163 = vmax.f32 %v159, 0.0
    %v164 = vld [vmem:[%s3 + $0x20] sm:$0xff]
    %v165 = vld [vmem:[%s3 + $0x28] sm:$0xff]
    %v166 = vld [vmem:[%s3 + $0x30] sm:$0xff]
    %v167 = vld [vmem:[%s3 + $0x38] sm:$0xff]
    %v168 = vld [vmem:[%s3 + $0x40] sm:$0xff]
    %v169 = vld [vmem:[%s3 + $0x48] sm:$0xff]
    %v170 = vld [vmem:[%s3 + $0x50] sm:$0xff]
    %v171 = vld [vmem:[%s3 + $0x58] sm:$0xff]
    %172 = vrot.lane.b32.xlu0 %v162, 9
    %v173 = vpop.permute.xlu0 %172
    %174 = vrot.lane.b32.xlu0 %v163, 9
    %v175 = vpop.permute.xlu0 %174
    %v176 = vld [vmem:[%s2 + $0x48] sm:$0xff]
    %v177 = vld [vmem:[%s2 + $0x50] sm:$0xff]
    %v178 = vmul.f32 %v173, %v176
    %v179 = vmul.f32 %v175, %v177
    %180 = vrot.lane.b32.xlu0 %v162, 8
    %v181 = vpop.permute.xlu0 %180
    %182 = vrot.lane.b32.xlu0 %v163, 8
    %v183 = vpop.permute.xlu0 %182
    %v184 = vld [vmem:[%s2 + $0x58] sm:$0xff]
    %v185 = vld [vmem:[%s2 + $0x60] sm:$0xff]
    %v186 = vmul.f32 %v181, %v184
    %v187 = vmul.f32 %v183, %v185
    %188 = vrot.lane.b32.xlu0 %v162, 7
    %v189 = vpop.permute.xlu0 %188
    %190 = vrot.lane.b32.xlu0 %v163, 7
    %v191 = vpop.permute.xlu0 %190
    %v192 = vld [vmem:[%s2 + $0x68] sm:$0xff]
    %v193 = vld [vmem:[%s2 + $0x70] sm:$0xff]
    %v194 = vmul.f32 %v189, %v192
    %v195 = vmul.f32 %v191, %v193
    %196 = vrot.lane.b32.xlu0 %v162, 1
    %v197 = vpop.permute.xlu0 %196
    %198 = vrot.lane.b32.xlu0 %v163, 1
    %v199 = vpop.permute.xlu0 %198
    %v200 = vld [vmem:[%s2 + $0x78] sm:$0xff]
    %v201 = vld [vmem:[%s2 + $0x80] sm:$0xff]
    %v202 = vmul.f32 %v197, %v200
    %v203 = vmul.f32 %v199, %v201
    %204 = vrot.lane.b32.xlu0 %v162, 127
    %v205 = vpop.permute.xlu0 %204
    %206 = vrot.lane.b32.xlu0 %v163, 127
    %v207 = vpop.permute.xlu0 %206
    %v208 = vld [vmem:[%s2 + $0x98] sm:$0xff]
    %v209 = vld [vmem:[%s2 + $0xa0] sm:$0xff]
    %v210 = vmul.f32 %v205, %v208
    %v211 = vmul.f32 %v207, %v209
    %212 = vrot.lane.b32.xlu0 %v162, 121
    %v213 = vpop.permute.xlu0 %212
    %214 = vrot.lane.b32.xlu0 %v163, 121
    %v215 = vpop.permute.xlu0 %214
    %v216 = vld [vmem:[%s2 + $0xa8] sm:$0xff]
    %v217 = vld [vmem:[%s2 + $0xb0] sm:$0xff]
    %v218 = vmul.f32 %v213, %v216
    %v219 = vmul.f32 %v215, %v217
    %220 = vrot.lane.b32.xlu0 %v162, 120
    %v221 = vpop.permute.xlu0 %220
    %222 = vrot.lane.b32.xlu0 %v163, 120
    %v223 = vpop.permute.xlu0 %222
    %v224 = vld [vmem:[%s2 + $0xb8] sm:$0xff]
    %v225 = vld [vmem:[%s2 + $0xc0] sm:$0xff]
    %v226 = vmul.f32 %v221, %v224
    %v227 = vmul.f32 %v223, %v225
    %228 = vrot.lane.b32.xlu0 %v162, 119
    %v229 = vpop.permute.xlu0 %228
    %230 = vrot.lane.b32.xlu0 %v163, 119
    %v231 = vpop.permute.xlu0 %230
    %v232 = vld [vmem:[%s2 + $0xc8] sm:$0xff]
    %v233 = vld [vmem:[%s2 + $0xd0] sm:$0xff]
    %v234 = vmul.f32 %v229, %v232
    %v235 = vmul.f32 %v231, %v233
    %237 = vset.pattern.permute.xlu0 16
    %238 = vperm.xlu0 %237, %v165
    %v239 = vpop.permute.xlu0 %238
    %242 = vset.pattern.permute.xlu0 16
    %243 = vperm.xlu0 %242, %v167
    %v244 = vpop.permute.xlu0 %243
    %247 = vset.pattern.permute.xlu0 16
    %248 = vperm.xlu0 %247, %v169
    %v249 = vpop.permute.xlu0 %248
    %252 = vset.pattern.permute.xlu0 16
    %253 = vperm.xlu0 %252, %v171
    %v254 = vpop.permute.xlu0 %253
    %vm256 = vcmask 130048
    %v257 = vsel %vm256, %v165, 0
    %v259 = vsel %vm256, %v167, 0
    %v261 = vsel %vm256, %v169, 0
    %v263 = vsel %vm256, %v171, 0
    %265 = vmatprep.subr.mxu0 0.0
    %266 = vmatpush1.msra.mxu0 %v178
    %267 = vmatprep.subr.mxu0 0.0
    %268 = vmatpush1.msra.mxu0 %v179
    %269 = vmatprep.subr.mxu0 0.0
    %270 = vmatpush1.msra.mxu0 %v186
    %271 = vmatprep.subr.mxu0 0.0
    %272 = vmatpush1.msra.mxu0 %v187
    %273 = vmatprep.subr.mxu0 0.0
    %274 = vmatpush1.msra.mxu0 %v194
    %275 = vmatprep.subr.mxu0 0.0
    %276 = vmatpush1.msra.mxu0 %v195
    %277 = vmatprep.subr.mxu0 0.0
    %278 = vmatpush1.msra.mxu0 %v202
    %279 = vmatprep.subr.mxu0 0.0
    %280 = vmatpush1.msra.mxu0 %v203
    %281 = vmatprep.subr.mxu0 0.0
    %282 = vmatpush1.msra.mxu0 %v162
    %283 = vmatprep.subr.mxu0 0.0
    %284 = vmatpush1.msra.mxu0 %v163
    %285 = vmatprep.subr.mxu0 0.0
    %286 = vmatpush1.msra.mxu0 %v210
    %287 = vmatprep.subr.mxu0 0.0
    %288 = vmatpush1.msra.mxu0 %v211
    %289 = vmatprep.subr.mxu0 0.0
    %290 = vmatpush1.msra.mxu0 %v218
    %291 = vmatprep.subr.mxu0 0.0
    %292 = vmatpush1.msra.mxu0 %v219
    %293 = vmatprep.subr.mxu0 0.0
    %294 = vmatpush1.msra.mxu0 %v226
    %295 = vmatprep.subr.mxu0 0.0
    %296 = vmatpush1.msra.mxu0 %v227
    %297 = vmatprep.subr.mxu0 0.0
    %298 = vmatpush1.msra.mxu0 %v234
    %299 = vmatprep.subr.mxu0 0.0
    %300 = vmatpush1.msra.mxu0 %v235
    %301 = vmatprep.subr.mxu0 0.0
    %302 = vmatpush1.msra.mxu0 0.0
    %303 = vmatprep.subr.mxu0 0.0
    %304 = vmatpush1.msra.mxu0 0.0
    %305 = vmatprep.subr.mxu0 0.0
    %306 = vmatpush1.msra.mxu0 0.0
    %307 = vmatprep.subr.mxu0 0.0
    %308 = vmatpush1.msra.mxu0 0.0
    %309 = vmatprep.subr.mxu0 0.0
    %310 = vmatpush1.msra.mxu0 0.0
    %311 = vmatprep.subr.mxu0 0.0
    %312 = vmatpush1.msra.mxu0 0.0
    %313 = vmatprep.subr.mxu0 0.0
    %314 = vmatpush1.msra.mxu0 0.0
    %315 = vmatprep.subr.mxu0 0.0
    %316 = vmatpush1.msra.mxu0 0.0
    %317 = vmatprep.subr.mxu0 0.0
    %318 = vmatpush1.msra.mxu0 0.0
    %319 = vmatprep.subr.mxu0 0.0
    %320 = vmatpush1.msra.mxu0 0.0
    %321 = vmatprep.subr.mxu0 0.0
    %322 = vmatpush1.msra.mxu0 0.0
    %323 = vmatprep.subr.mxu0 0.0
    %324 = vmatpush1.msra.mxu0 0.0
    %325 = vmatprep.subr.mxu0 0.0
    %326 = vmatpush1.msra.mxu0 0.0
    %327 = vmatprep.subr.mxu0 0.0
    %328 = vmatpush1.msra.mxu0 0.0
    %329 = vmatprep.mubr.f32.mxu0 %v257
    %330 = vmatmul.mubr.f32.gmra.mrb[0].mxu0 %v164
    %v331 = vpop.f32.mrb[0].mxu0
    %v332 = vadd.f32 %v239, %v331
    %v333 = vpop.f32.mrb[0].mxu0
    %334 = vmatprep.mubr.f32.mxu0 %v259
    %335 = vmatmul.mubr.f32.gmra.mrb[0].mxu0 %v166
    %v336 = vpop.f32.mrb[0].mxu0
    %v337 = vadd.f32 %v244, %v336
    %v338 = vpop.f32.mrb[0].mxu0
    %339 = vmatprep.mubr.f32.mxu0 %v261
    %340 = vmatmul.mubr.f32.gmra.mrb[0].mxu0 %v168
    %v341 = vpop.f32.mrb[0].mxu0
    %v342 = vadd.f32 %v249, %v341
    %v343 = vpop.f32.mrb[0].mxu0
    %344 = vmatprep.mubr.f32.mxu0 %v263
    %345 = vmatmul.mubr.f32.gmra.mrb[0].mxu0 %v170
    %v346 = vpop.f32.mrb[0].mxu0
    %v347 = vadd.f32 %v254, %v346
    %v348 = vpop.f32.mrb[0].mxu0
    %349 = vdwg.mxu0
    %v350 = vmax.f32 %v332, 0.0
    %v351 = vmax.f32 %v337, 0.0
    %v352 = vmax.f32 %v342, 0.0
    %v353 = vmax.f32 %v347, 0.0
    %v354 = vld [vmem:[%s4] sm:$0xff]
    %v355 = vld [vmem:[%s4 + $0x8] sm:$0xff]
    %v356 = vld [vmem:[%s4 + $0x10] sm:$0xff]
    %v357 = vld [vmem:[%s4 + $0x18] sm:$0xff]
    %v358 = vld [vmem:[%s4 + $0x20] sm:$0xff]
    %v359 = vld [vmem:[%s4 + $0x28] sm:$0xff]
    %v360 = vld [vmem:[%s4 + $0x30] sm:$0xff]
    %v361 = vld [vmem:[%s4 + $0x38] sm:$0xff]
    %v362 = vld [vmem:[%s4 + $0x40] sm:$0xff]
    %v363 = vld [vmem:[%s4 + $0x48] sm:$0xff]
    %v364 = vld [vmem:[%s4 + $0x50] sm:$0xff]
    %v365 = vld [vmem:[%s4 + $0x58] sm:$0xff]
    %v366 = vld [vmem:[%s4 + $0x60] sm:$0xff]
    %v367 = vld [vmem:[%s4 + $0x68] sm:$0xff]
    %v368 = vld [vmem:[%s4 + $0x70] sm:$0xff]
    %v369 = vld [vmem:[%s4 + $0x78] sm:$0xff]
    %370 = vmatprep.subr.mxu0 0.0
    %371 = vmatpush1.msra.mxu0 %v354
    %372 = vmatprep.subr.mxu0 0.0
    %373 = vmatpush1.msra.mxu0 %v355
    %374 = vmatprep.subr.mxu0 0.0
    %375 = vmatpush1.msra.mxu0 %v356
    %376 = vmatprep.subr.mxu0 0.0
    %377 = vmatpush1.msra.mxu0 %v357
    %378 = vmatprep.subr.mxu0 0.0
    %379 = vmatpush1.msra.mxu0 %v358
    %380 = vmatprep.subr.mxu0 0.0
    %381 = vmatpush1.msra.mxu0 %v359
    %382 = vmatprep.subr.mxu0 0.0
    %383 = vmatpush1.msra.mxu0 %v360
    %384 = vmatprep.subr.mxu0 0.0
    %385 = vmatpush1.msra.mxu0 %v361
    %386 = vmatprep.subr.mxu0 0.0
    %387 = vmatpush1.msra.mxu0 %v362
    %388 = vmatprep.subr.mxu0 0.0
    %389 = vmatpush1.msra.mxu0 %v363
    %390 = vmatprep.subr.mxu0 0.0
    %391 = vmatpush1.msra.mxu0 %v364
    %392 = vmatprep.subr.mxu0 0.0
    %393 = vmatpush1.msra.mxu0 %v365
    %394 = vmatprep.subr.mxu0 0.0
    %395 = vmatpush1.msra.mxu0 %v366
    %396 = vmatprep.subr.mxu0 0.0
    %397 = vmatpush1.msra.mxu0 %v367
    %398 = vmatprep.subr.mxu0 0.0
    %399 = vmatpush1.msra.mxu0 %v368
    %400 = vmatprep.subr.mxu0 0.0
    %401 = vmatpush1.msra.mxu0 %v369
    %402 = vmatprep.subr.mxu0 0.0
    %403 = vmatpush1.msra.mxu0 0.0
    %404 = vmatprep.subr.mxu0 0.0
    %405 = vmatpush1.msra.mxu0 0.0
    %406 = vmatprep.subr.mxu0 0.0
    %407 = vmatpush1.msra.mxu0 0.0
    %408 = vmatprep.subr.mxu0 0.0
    %409 = vmatpush1.msra.mxu0 0.0
    %410 = vmatprep.subr.mxu0 0.0
    %411 = vmatpush1.msra.mxu0 0.0
    %412 = vmatprep.subr.mxu0 0.0
    %413 = vmatpush1.msra.mxu0 0.0
    %414 = vmatprep.subr.mxu0 0.0
    %415 = vmatpush1.msra.mxu0 0.0
    %416 = vmatprep.subr.mxu0 0.0
    %417 = vmatpush1.msra.mxu0 0.0
    %418 = vmatprep.subr.mxu0 0.0
    %419 = vmatpush1.msra.mxu0 0.0
    %420 = vmatprep.subr.mxu0 0.0
    %421 = vmatpush1.msra.mxu0 0.0
    %422 = vmatprep.subr.mxu0 0.0
    %423 = vmatpush1.msra.mxu0 0.0
    %424 = vmatprep.subr.mxu0 0.0
    %425 = vmatpush1.msra.mxu0 0.0
    %426 = vmatprep.subr.mxu0 0.0
    %427 = vmatpush1.msra.mxu0 0.0
    %428 = vmatprep.subr.mxu0 0.0
    %429 = vmatpush1.msra.mxu0 0.0
    %430 = vmatprep.subr.mxu0 0.0
    %431 = vmatpush1.msra.mxu0 0.0
    %432 = vmatprep.subr.mxu0 0.0
    %433 = vmatpush1.msra.mxu0 0.0
    %434 = vmatprep.mubr.f32.mxu0 0.0
    %435 = vmatmul.mubr.f32.gmra.mrb[0].mxu0 %v350
    %v436 = vpop.f32.mrb[0].mxu0
    %v437 = vadd.f32 0.0, %v436
    %v438 = vpop.f32.mrb[0].mxu0
    %439 = vmatprep.mubr.f32.mxu0 0.0
    %440 = vmatmul.mubr.f32.gmra.mrb[0].mxu0 %v351
    %v441 = vpop.f32.mrb[0].mxu0
    %v442 = vadd.f32 0.0, %v441
    %v443 = vpop.f32.mrb[0].mxu0
    %444 = vmatprep.mubr.f32.mxu0 0.0
    %445 = vmatmul.mubr.f32.gmra.mrb[0].mxu0 %v352
    %v446 = vpop.f32.mrb[0].mxu0
    %v447 = vadd.f32 0.0, %v446
    %v448 = vpop.f32.mrb[0].mxu0
    %449 = vmatprep.mubr.f32.mxu0 0.0
    %450 = vmatmul.mubr.f32.gmra.mrb[0].mxu0 %v353
    %v451 = vpop.f32.mrb[0].mxu0
    %v452 = vadd.f32 0.0, %v451
    %v453 = vpop.f32.mrb[0].mxu0
    %454 = vmatprep.mubr.f32.mxu0 0.0
    %455 = vmatmul.mubr.f32.gmra.mrb[0].mxu0 %v37
    %v456 = vpop.f32.mrb[0].mxu0
    %v457 = vadd.f32 0.0, %v456
    %v458 = vpop.f32.mrb[0].mxu0
    %459 = vdwg.mxu0
    %464 = vrot.lane.b32.xlu0 %v437, 126
    %v465 = vpop.permute.xlu0 %464
    %466 = vrot.lane.b32.xlu0 %v442, 126
    %v467 = vpop.permute.xlu0 %466
    %468 = vrot.lane.b32.xlu0 %v447, 126
    %v469 = vpop.permute.xlu0 %468
    %470 = vrot.lane.b32.xlu0 %v452, 126
    %v471 = vpop.permute.xlu0 %470
    %476 = vrot.lane.b32.xlu0 %v437, 124
    %v477 = vpop.permute.xlu0 %476
    %478 = vrot.lane.b32.xlu0 %v442, 124
    %v479 = vpop.permute.xlu0 %478
    %480 = vrot.lane.b32.xlu0 %v447, 124
    %v481 = vpop.permute.xlu0 %480
    %482 = vrot.lane.b32.xlu0 %v452, 124
    %v483 = vpop.permute.xlu0 %482
    %488 = vrot.lane.b32.xlu0 %v437, 122
    %v489 = vpop.permute.xlu0 %488
    %490 = vrot.lane.b32.xlu0 %v442, 122
    %v491 = vpop.permute.xlu0 %490
    %492 = vrot.lane.b32.xlu0 %v447, 122
    %v493 = vpop.permute.xlu0 %492
    %494 = vrot.lane.b32.xlu0 %v452, 122
    %v495 = vpop.permute.xlu0 %494
    %501 = vrot.lane.b32.xlu0 %v457, 120
    %v502 = vpop.permute.xlu0 %501
    %v504 = vld [vmem:[%s5] sm:$0xff]
    %v505 = vld [vmem:[%s5 + $0x8] sm:$0xff]
    %v506 = vld [vmem:[%s5 + $0x10] sm:$0xff]
    %v507 = vld [vmem:[%s5 + $0x18] sm:$0xff]
    %v508 = vld [vmem:[%s5 + $0x20] sm:$0xff]
    %v509 = vld [vmem:[%s5 + $0x28] sm:$0xff]
    %v510 = vld [vmem:[%s5 + $0x30] sm:$0xff]
    %v511 = vld [vmem:[%s5 + $0x38] sm:$0xff]
    %v512 = vld [vmem:[%s5 + $0x40] sm:$0xff]
    %v513 = vld [vmem:[%s5 + $0x48] sm:$0xff]
    %v514 = vld [vmem:[%s5 + $0x50] sm:$0xff]
    %v515 = vld [vmem:[%s5 + $0x58] sm:$0xff]
    %v516 = vld [vmem:[%s5 + $0x60] sm:$0xff]
    %v517 = vld [vmem:[%s5 + $0x68] sm:$0xff]
    %v518 = vld [vmem:[%s5 + $0x70] sm:$0xff]
    %v519 = vld [vmem:[%s5 + $0x78] sm:$0xff]
    %v520 = vld [vmem:[%s5 + $0x80] sm:$0xff]
    %v521 = vld [vmem:[%s5 + $0x88] sm:$0xff]
    %v522 = vld [vmem:[%s5 + $0x90] sm:$0xff]
    %v523 = vld [vmem:[%s5 + $0x98] sm:$0xff]
    %v524 = vld [vmem:[%s5 + $0xa0] sm:$0xff]
    %v525 = vld [vmem:[%s5 + $0xa8] sm:$0xff]
    %v526 = vld [vmem:[%s5 + $0xb0] sm:$0xff]
    %v527 = vld [vmem:[%s5 + $0xb8] sm:$0xff]
    %v528 = vld [vmem:[%s5 + $0xc0] sm:$0xff]
    %v529 = vld [vmem:[%s5 + $0xc8] sm:$0xff]
    %v530 = vld [vmem:[%s5 + $0xd0] sm:$0xff]
    %v531 = vld [vmem:[%s5 + $0xd8] sm:$0xff]
    %v532 = vld [vmem:[%s5 + $0xe0] sm:$0xff]
    %v533 = vld [vmem:[%s5 + $0xe8] sm:$0xff]
    %v534 = vld [vmem:[%s5 + $0xf0] sm:$0xff]
    %v535 = vld [vmem:[%s5 + $0xf8] sm:$0xff]
    %v536 = vld [vmem:[%s5 + $0x100] sm:$0xff]
    %v537 = vld [vmem:[%s5 + $0x108] sm:$0xff]
    %v538 = vld [vmem:[%s5 + $0x110] sm:$0xff]
    %v539 = vld [vmem:[%s5 + $0x118] sm:$0xff]
    %v540 = vld [vmem:[%s5 + $0x120] sm:$0xff]
    %v541 = vld [vmem:[%s5 + $0x128] sm:$0xff]
    %v542 = vld [vmem:[%s5 + $0x130] sm:$0xff]
    %v543 = vld [vmem:[%s5 + $0x138] sm:$0xff]
    %v544 = vld [vmem:[%s5 + $0x140] sm:$0xff]
    %v545 = vld [vmem:[%s5 + $0x148] sm:$0xff]
    %v546 = vld [vmem:[%s5 + $0x150] sm:$0xff]
    %v547 = vld [vmem:[%s5 + $0x158] sm:$0xff]
    %v548 = vld [vmem:[%s5 + $0x160] sm:$0xff]
    %v549 = vld [vmem:[%s5 + $0x168] sm:$0xff]
    %v550 = vld [vmem:[%s5 + $0x170] sm:$0xff]
    %v551 = vld [vmem:[%s5 + $0x178] sm:$0xff]
    %v552 = vld [vmem:[%s5 + $0x180] sm:$0xff]
    %v553 = vld [vmem:[%s5 + $0x188] sm:$0xff]
    %v554 = vld [vmem:[%s5 + $0x190] sm:$0xff]
    %v555 = vld [vmem:[%s5 + $0x198] sm:$0xff]
    %v556 = vld [vmem:[%s5 + $0x1a0] sm:$0xff]
    %v557 = vld [vmem:[%s5 + $0x1a8] sm:$0xff]
    %v558 = vld [vmem:[%s5 + $0x1b0] sm:$0xff]
    %v559 = vld [vmem:[%s5 + $0x1b8] sm:$0xff]
    %v560 = vld [vmem:[%s5 + $0x1c0] sm:$0xff]
    %v561 = vld [vmem:[%s5 + $0x1c8] sm:$0xff]
    %v562 = vld [vmem:[%s5 + $0x1d0] sm:$0xff]
    %v563 = vld [vmem:[%s5 + $0x1d8] sm:$0xff]
    %v564 = vld [vmem:[%s5 + $0x1e0] sm:$0xff]
    %v565 = vld [vmem:[%s5 + $0x1e8] sm:$0xff]
    %v566 = vld [vmem:[%s5 + $0x1f0] sm:$0xff]
    %v567 = vld [vmem:[%s5 + $0x1f8] sm:$0xff]
    %569 = vset.pattern.permute.xlu0 8
    %570 = vperm.xlu0 %569, %v505
    %v571 = vpop.permute.xlu0 %570
    %574 = vset.pattern.permute.xlu0 8
    %575 = vperm.xlu0 %574, %v507
    %v576 = vpop.permute.xlu0 %575
    %579 = vset.pattern.permute.xlu0 8
    %580 = vperm.xlu0 %579, %v509
    %v581 = vpop.permute.xlu0 %580
    %584 = vset.pattern.permute.xlu0 8
    %585 = vperm.xlu0 %584, %v511
    %v586 = vpop.permute.xlu0 %585
    %589 = vset.pattern.permute.xlu0 8
    %590 = vperm.xlu0 %589, %v513
    %v591 = vpop.permute.xlu0 %590
    %594 = vset.pattern.permute.xlu0 8
    %595 = vperm.xlu0 %594, %v515
    %v596 = vpop.permute.xlu0 %595
    %599 = vset.pattern.permute.xlu0 8
    %600 = vperm.xlu0 %599, %v517
    %v601 = vpop.permute.xlu0 %600
    %604 = vset.pattern.permute.xlu0 8
    %605 = vperm.xlu0 %604, %v519
    %v606 = vpop.permute.xlu0 %605
    %609 = vset.pattern.permute.xlu0 8
    %610 = vperm.xlu0 %609, %v521
    %v611 = vpop.permute.xlu0 %610
    %614 = vset.pattern.permute.xlu0 8
    %615 = vperm.xlu0 %614, %v523
    %v616 = vpop.permute.xlu0 %615
    %619 = vset.pattern.permute.xlu0 8
    %620 = vperm.xlu0 %619, %v525
    %v621 = vpop.permute.xlu0 %620
    %624 = vset.pattern.permute.xlu0 8
    %625 = vperm.xlu0 %624, %v527
    %v626 = vpop.permute.xlu0 %625
    %629 = vset.pattern.permute.xlu0 8
    %630 = vperm.xlu0 %629, %v529
    %v631 = vpop.permute.xlu0 %630
    %634 = vset.pattern.permute.xlu0 8
    %635 = vperm.xlu0 %634, %v531
    %v636 = vpop.permute.xlu0 %635
    %639 = vset.pattern.permute.xlu0 8
    %640 = vperm.xlu0 %639, %v533
    %v641 = vpop.permute.xlu0 %640
    %644 = vset.pattern.permute.xlu0 8
    %645 = vperm.xlu0 %644, %v535
    %v646 = vpop.permute.xlu0 %645
    %649 = vset.pattern.permute.xlu0 8
    %650 = vperm.xlu0 %649, %v537
    %v651 = vpop.permute.xlu0 %650
    %654 = vset.pattern.permute.xlu0 8
    %655 = vperm.xlu0 %654, %v539
    %v656 = vpop.permute.xlu0 %655
    %659 = vset.pattern.permute.xlu0 8
    %660 = vperm.xlu0 %659, %v541
    %v661 = vpop.permute.xlu0 %660
    %664 = vset.pattern.permute.xlu0 8
    %665 = vperm.xlu0 %664, %v543
    %v666 = vpop.permute.xlu0 %665
    %669 = vset.pattern.permute.xlu0 8
    %670 = vperm.xlu0 %669, %v545
    %v671 = vpop.permute.xlu0 %670
    %674 = vset.pattern.permute.xlu0 8
    %675 = vperm.xlu0 %674, %v547
    %v676 = vpop.permute.xlu0 %675
    %679 = vset.pattern.permute.xlu0 8
    %680 = vperm.xlu0 %679, %v549
    %v681 = vpop.permute.xlu0 %680
    %684 = vset.pattern.permute.xlu0 8
    %685 = vperm.xlu0 %684, %v551
    %v686 = vpop.permute.xlu0 %685
    %689 = vset.pattern.permute.xlu0 8
    %690 = vperm.xlu0 %689, %v553
    %v691 = vpop.permute.xlu0 %690
    %694 = vset.pattern.permute.xlu0 8
    %695 = vperm.xlu0 %694, %v555
    %v696 = vpop.permute.xlu0 %695
    %699 = vset.pattern.permute.xlu0 8
    %700 = vperm.xlu0 %699, %v557
    %v701 = vpop.permute.xlu0 %700
    %704 = vset.pattern.permute.xlu0 8
    %705 = vperm.xlu0 %704, %v559
    %v706 = vpop.permute.xlu0 %705
    %709 = vset.pattern.permute.xlu0 8
    %710 = vperm.xlu0 %709, %v561
    %v711 = vpop.permute.xlu0 %710
    %714 = vset.pattern.permute.xlu0 8
    %715 = vperm.xlu0 %714, %v563
    %v716 = vpop.permute.xlu0 %715
    %719 = vset.pattern.permute.xlu0 8
    %720 = vperm.xlu0 %719, %v565
    %v721 = vpop.permute.xlu0 %720
    %724 = vset.pattern.permute.xlu0 8
    %725 = vperm.xlu0 %724, %v567
    %v726 = vpop.permute.xlu0 %725
    %vm728 = vcmask 64512
    %v729 = vsel %vm728, %v505, 0
    %v731 = vsel %vm728, %v507, 0
    %v733 = vsel %vm728, %v509, 0
    %v735 = vsel %vm728, %v511, 0
    %v737 = vsel %vm728, %v513, 0
    %v739 = vsel %vm728, %v515, 0
    %v741 = vsel %vm728, %v517, 0
    %v743 = vsel %vm728, %v519, 0
    %v745 = vsel %vm728, %v521, 0
    %v747 = vsel %vm728, %v523, 0
    %v749 = vsel %vm728, %v525, 0
    %v751 = vsel %vm728, %v527, 0
    %v753 = vsel %vm728, %v529, 0
    %v755 = vsel %vm728, %v531, 0
    %v757 = vsel %vm728, %v533, 0
    %v759 = vsel %vm728, %v535, 0
    %v761 = vsel %vm728, %v537, 0
    %v763 = vsel %vm728, %v539, 0
    %v765 = vsel %vm728, %v541, 0
    %v767 = vsel %vm728, %v543, 0
    %v769 = vsel %vm728, %v545, 0
    %v771 = vsel %vm728, %v547, 0
    %v773 = vsel %vm728, %v549, 0
    %v775 = vsel %vm728, %v551, 0
    %v777 = vsel %vm728, %v553, 0
    %v779 = vsel %vm728, %v555, 0
    %v781 = vsel %vm728, %v557, 0
    %v783 = vsel %vm728, %v559, 0
    %v785 = vsel %vm728, %v561, 0
    %v787 = vsel %vm728, %v563, 0
    %v789 = vsel %vm728, %v565, 0
    %v791 = vsel %vm728, %v567, 0
    %793 = vmatprep.subr.mxu0 0.0
    %794 = vmatpush1.msra.mxu0 %v437
    %795 = vmatprep.subr.mxu0 0.0
    %796 = vmatpush1.msra.mxu0 %v442
    %797 = vmatprep.subr.mxu0 0.0
    %798 = vmatpush1.msra.mxu0 %v447
    %799 = vmatprep.subr.mxu0 0.0
    %800 = vmatpush1.msra.mxu0 %v452
    %801 = vmatprep.subr.mxu0 0.0
    %802 = vmatpush1.msra.mxu0 %v465
    %803 = vmatprep.subr.mxu0 0.0
    %804 = vmatpush1.msra.mxu0 %v467
    %805 = vmatprep.subr.mxu0 0.0
    %806 = vmatpush1.msra.mxu0 %v469
    %807 = vmatprep.subr.mxu0 0.0
    %808 = vmatpush1.msra.mxu0 %v471
    %809 = vmatprep.subr.mxu0 0.0
    %810 = vmatpush1.msra.mxu0 %v477
    %811 = vmatprep.subr.mxu0 0.0
    %812 = vmatpush1.msra.mxu0 %v479
    %813 = vmatprep.subr.mxu0 0.0
    %814 = vmatpush1.msra.mxu0 %v481
    %815 = vmatprep.subr.mxu0 0.0
    %816 = vmatpush1.msra.mxu0 %v483
    %817 = vmatprep.subr.mxu0 0.0
    %818 = vmatpush1.msra.mxu0 %v489
    %819 = vmatprep.subr.mxu0 0.0
    %820 = vmatpush1.msra.mxu0 %v491
    %821 = vmatprep.subr.mxu0 0.0
    %822 = vmatpush1.msra.mxu0 %v493
    %823 = vmatprep.subr.mxu0 0.0
    %824 = vmatpush1.msra.mxu0 %v495
    %825 = vmatprep.subr.mxu0 0.0
    %826 = vmatpush1.msra.mxu0 %v502
    %827 = vmatprep.subr.mxu0 0.0
    %828 = vmatpush1.msra.mxu0 0.0
    %829 = vmatprep.subr.mxu0 0.0
    %830 = vmatpush1.msra.mxu0 0.0
    %831 = vmatprep.subr.mxu0 0.0
    %832 = vmatpush1.msra.mxu0 0.0
    %833 = vmatprep.subr.mxu0 0.0
    %834 = vmatpush1.msra.mxu0 0.0
    %835 = vmatprep.subr.mxu0 0.0
    %836 = vmatpush1.msra.mxu0 0.0
    %837 = vmatprep.subr.mxu0 0.0
    %838 = vmatpush1.msra.mxu0 0.0
    %839 = vmatprep.subr.mxu0 0.0
    %840 = vmatpush1.msra.mxu0 0.0
    %841 = vmatprep.subr.mxu0 0.0
    %842 = vmatpush1.msra.mxu0 0.0
    %843 = vmatprep.subr.mxu0 0.0
    %844 = vmatpush1.msra.mxu0 0.0
    %845 = vmatprep.subr.mxu0 0.0
    %846 = vmatpush1.msra.mxu0 0.0
    %847 = vmatprep.subr.mxu0 0.0
    %848 = vmatpush1.msra.mxu0 0.0
    %849 = vmatprep.subr.mxu0 0.0
    %850 = vmatpush1.msra.mxu0 0.0
    %851 = vmatprep.subr.mxu0 0.0
    %852 = vmatpush1.msra.mxu0 0.0
    %853 = vmatprep.subr.mxu0 0.0
    %854 = vmatpush1.msra.mxu0 0.0
    %855 = vmatprep.subr.mxu0 0.0
    %856 = vmatpush1.msra.mxu0 0.0
    %857 = vmatprep.mubr.f32.mxu0 %v729
    %858 = vmatmul.mubr.f32.gmra.mrb[0].mxu0 %v504
    %v859 = vpop.f32.mrb[0].mxu0
    %v860 = vadd.f32 %v571, %v859
    %v861 = vpop.f32.mrb[0].mxu0
    %862 = vmatprep.mubr.f32.mxu0 %v731
    %863 = vmatmul.mubr.f32.gmra.mrb[0].mxu0 %v506
    %v864 = vpop.f32.mrb[0].mxu0
    %v865 = vadd.f32 %v576, %v864
    %v866 = vpop.f32.mrb[0].mxu0
    %867 = vmatprep.mubr.f32.mxu0 %v733
    %868 = vmatmul.mubr.f32.gmra.mrb[0].mxu0 %v508
    %v869 = vpop.f32.mrb[0].mxu0
    %v870 = vadd.f32 %v581, %v869
    %v871 = vpop.f32.mrb[0].mxu0
    %872 = vmatprep.mubr.f32.mxu0 %v735
    %873 = vmatmul.mubr.f32.gmra.mrb[0].mxu0 %v510
    %v874 = vpop.f32.mrb[0].mxu0
    %v875 = vadd.f32 %v586, %v874
    %v876 = vpop.f32.mrb[0].mxu0
    %877 = vmatprep.mubr.f32.mxu0 %v737
    %878 = vmatmul.mubr.f32.gmra.mrb[0].mxu0 %v512
    %v879 = vpop.f32.mrb[0].mxu0
    %v880 = vadd.f32 %v591, %v879
    %v881 = vpop.f32.mrb[0].mxu0
    %882 = vmatprep.mubr.f32.mxu0 %v739
    %883 = vmatmul.mubr.f32.gmra.mrb[0].mxu0 %v514
    %v884 = vpop.f32.mrb[0].mxu0
    %v885 = vadd.f32 %v596, %v884
    %v886 = vpop.f32.mrb[0].mxu0
    %887 = vmatprep.mubr.f32.mxu0 %v741
    %888 = vmatmul.mubr.f32.gmra.mrb[0].mxu0 %v516
    %v889 = vpop.f32.mrb[0].mxu0
    %v890 = vadd.f32 %v601, %v889
    %v891 = vpop.f32.mrb[0].mxu0
    %892 = vmatprep.mubr.f32.mxu0 %v743
    %893 = vmatmul.mubr.f32.gmra.mrb[0].mxu0 %v518
    %v894 = vpop.f32.mrb[0].mxu0
    %v895 = vadd.f32 %v606, %v894
    %v896 = vpop.f32.mrb[0].mxu0
    %897 = vmatprep.mubr.f32.mxu0 %v745
    %898 = vmatmul.mubr.f32.gmra.mrb[0].mxu0 %v520
    %v899 = vpop.f32.mrb[0].mxu0
    %v900 = vadd.f32 %v611, %v899
    %v901 = vpop.f32.mrb[0].mxu0
    %902 = vmatprep.mubr.f32.mxu0 %v747
    %903 = vmatmul.mubr.f32.gmra.mrb[0].mxu0 %v522
    %v904 = vpop.f32.mrb[0].mxu0
    %v905 = vadd.f32 %v616, %v904
    %v906 = vpop.f32.mrb[0].mxu0
    %907 = vmatprep.mubr.f32.mxu0 %v749
    %908 = vmatmul.mubr.f32.gmra.mrb[0].mxu0 %v524
    %v909 = vpop.f32.mrb[0].mxu0
    %v910 = vadd.f32 %v621, %v909
    %v911 = vpop.f32.mrb[0].mxu0
    %912 = vmatprep.mubr.f32.mxu0 %v751
    %913 = vmatmul.mubr.f32.gmra.mrb[0].mxu0 %v526
    %v914 = vpop.f32.mrb[0].mxu0
    %v915 = vadd.f32 %v626, %v914
    %v916 = vpop.f32.mrb[0].mxu0
    %917 = vmatprep.mubr.f32.mxu0 %v753
    %918 = vmatmul.mubr.f32.gmra.mrb[0].mxu0 %v528
    %v919 = vpop.f32.mrb[0].mxu0
    %v920 = vadd.f32 %v631, %v919
    %v921 = vpop.f32.mrb[0].mxu0
    %922 = vmatprep.mubr.f32.mxu0 %v755
    %923 = vmatmul.mubr.f32.gmra.mrb[0].mxu0 %v530
    %v924 = vpop.f32.mrb[0].mxu0
    %v925 = vadd.f32 %v636, %v924
    %v926 = vpop.f32.mrb[0].mxu0
    %927 = vmatprep.mubr.f32.mxu0 %v757
    %928 = vmatmul.mubr.f32.gmra.mrb[0].mxu0 %v532
    %v929 = vpop.f32.mrb[0].mxu0
    %v930 = vadd.f32 %v641, %v929
    %v931 = vpop.f32.mrb[0].mxu0
    %932 = vmatprep.mubr.f32.mxu0 %v759
    %933 = vmatmul.mubr.f32.gmra.mrb[0].mxu0 %v534
    %v934 = vpop.f32.mrb[0].mxu0
    %v935 = vadd.f32 %v646, %v934
    %v936 = vpop.f32.mrb[0].mxu0
    %937 = vmatprep.mubr.f32.mxu0 %v761
    %938 = vmatmul.mubr.f32.gmra.mrb[0].mxu0 %v536
    %v939 = vpop.f32.mrb[0].mxu0
    %v940 = vadd.f32 %v651, %v939
    %v941 = vpop.f32.mrb[0].mxu0
    %942 = vmatprep.mubr.f32.mxu0 %v763
    %943 = vmatmul.mubr.f32.gmra.mrb[0].mxu0 %v538
    %v944 = vpop.f32.mrb[0].mxu0
    %v945 = vadd.f32 %v656, %v944
    %v946 = vpop.f32.mrb[0].mxu0
    %947 = vmatprep.mubr.f32.mxu0 %v765
    %948 = vmatmul.mubr.f32.gmra.mrb[0].mxu0 %v540
    %v949 = vpop.f32.mrb[0].mxu0
    %v950 = vadd.f32 %v661, %v949
    %v951 = vpop.f32.mrb[0].mxu0
    %952 = vmatprep.mubr.f32.mxu0 %v767
    %953 = vmatmul.mubr.f32.gmra.mrb[0].mxu0 %v542
    %v954 = vpop.f32.mrb[0].mxu0
    %v955 = vadd.f32 %v666, %v954
    %v956 = vpop.f32.mrb[0].mxu0
    %957 = vmatprep.mubr.f32.mxu0 %v769
    %958 = vmatmul.mubr.f32.gmra.mrb[0].mxu0 %v544
    %v959 = vpop.f32.mrb[0].mxu0
    %v960 = vadd.f32 %v671, %v959
    %v961 = vpop.f32.mrb[0].mxu0
    %962 = vmatprep.mubr.f32.mxu0 %v771
    %963 = vmatmul.mubr.f32.gmra.mrb[0].mxu0 %v546
    %v964 = vpop.f32.mrb[0].mxu0
    %v965 = vadd.f32 %v676, %v964
    %v966 = vpop.f32.mrb[0].mxu0
    %967 = vmatprep.mubr.f32.mxu0 %v773
    %968 = vmatmul.mubr.f32.gmra.mrb[0].mxu0 %v548
    %v969 = vpop.f32.mrb[0].mxu0
    %v970 = vadd.f32 %v681, %v969
    %v971 = vpop.f32.mrb[0].mxu0
    %972 = vmatprep.mubr.f32.mxu0 %v775
    %973 = vmatmul.mubr.f32.gmra.mrb[0].mxu0 %v550
    %v974 = vpop.f32.mrb[0].mxu0
    %v975 = vadd.f32 %v686, %v974
    %v976 = vpop.f32.mrb[0].mxu0
    %977 = vmatprep.mubr.f32.mxu0 %v777
    %978 = vmatmul.mubr.f32.gmra.mrb[0].mxu0 %v552
    %v979 = vpop.f32.mrb[0].mxu0
    %v980 = vadd.f32 %v691, %v979
    %v981 = vpop.f32.mrb[0].mxu0
    %982 = vmatprep.mubr.f32.mxu0 %v779
    %983 = vmatmul.mubr.f32.gmra.mrb[0].mxu0 %v554
    %v984 = vpop.f32.mrb[0].mxu0
    %v985 = vadd.f32 %v696, %v984
    %v986 = vpop.f32.mrb[0].mxu0
    %987 = vmatprep.mubr.f32.mxu0 %v781
    %988 = vmatmul.mubr.f32.gmra.mrb[0].mxu0 %v556
    %v989 = vpop.f32.mrb[0].mxu0
    %v990 = vadd.f32 %v701, %v989
    %v991 = vpop.f32.mrb[0].mxu0
    %992 = vmatprep.mubr.f32.mxu0 %v783
    %993 = vmatmul.mubr.f32.gmra.mrb[0].mxu0 %v558
    %v994 = vpop.f32.mrb[0].mxu0
    %v995 = vadd.f32 %v706, %v994
    %v996 = vpop.f32.mrb[0].mxu0
    %997 = vmatprep.mubr.f32.mxu0 %v785
    %998 = vmatmul.mubr.f32.gmra.mrb[0].mxu0 %v560
    %v999 = vpop.f32.mrb[0].mxu0
    %v1000 = vadd.f32 %v711, %v999
    %v1001 = vpop.f32.mrb[0].mxu0
    %1002 = vmatprep.mubr.f32.mxu0 %v787
    %1003 = vmatmul.mubr.f32.gmra.mrb[0].mxu0 %v562
    %v1004 = vpop.f32.mrb[0].mxu0
    %v1005 = vadd.f32 %v716, %v1004
    %v1006 = vpop.f32.mrb[0].mxu0
    %1007 = vmatprep.mubr.f32.mxu0 %v789
    %1008 = vmatmul.mubr.f32.gmra.mrb[0].mxu0 %v564
    %v1009 = vpop.f32.mrb[0].mxu0
    %v1010 = vadd.f32 %v721, %v1009
    %v1011 = vpop.f32.mrb[0].mxu0
    %1012 = vmatprep.mubr.f32.mxu0 %v791
    %1013 = vmatmul.mubr.f32.gmra.mrb[0].mxu0 %v566
    %v1014 = vpop.f32.mrb[0].mxu0
    %v1015 = vadd.f32 %v726, %v1014
    %v1016 = vpop.f32.mrb[0].mxu0
    %1017 = vdwg.mxu0
    %v1018 = vmax.f32 %v860, 0.0
    %v1019 = vmax.f32 %v865, 0.0
    %v1020 = vmax.f32 %v870, 0.0
    %v1021 = vmax.f32 %v875, 0.0
    %v1022 = vmax.f32 %v880, 0.0
    %v1023 = vmax.f32 %v885, 0.0
    %v1024 = vmax.f32 %v890, 0.0
    %v1025 = vmax.f32 %v895, 0.0
    %v1026 = vmax.f32 %v900, 0.0
    %v1027 = vmax.f32 %v905, 0.0
    %v1028 = vmax.f32 %v910, 0.0
    %v1029 = vmax.f32 %v915, 0.0
    %v1030 = vmax.f32 %v920, 0.0
    %v1031 = vmax.f32 %v925, 0.0
    %v1032 = vmax.f32 %v930, 0.0
    %v1033 = vmax.f32 %v935, 0.0
    %v1034 = vmax.f32 %v940, 0.0
    %v1035 = vmax.f32 %v945, 0.0
    %v1036 = vmax.f32 %v950, 0.0
    %v1037 = vmax.f32 %v955, 0.0
    %v1038 = vmax.f32 %v960, 0.0
    %v1039 = vmax.f32 %v965, 0.0
    %v1040 = vmax.f32 %v970, 0.0
    %v1041 = vmax.f32 %v975, 0.0
    %v1042 = vmax.f32 %v980, 0.0
    %v1043 = vmax.f32 %v985, 0.0
    %v1044 = vmax.f32 %v990, 0.0
    %v1045 = vmax.f32 %v995, 0.0
    %v1046 = vmax.f32 %v1000, 0.0
    %v1047 = vmax.f32 %v1005, 0.0
    %v1048 = vmax.f32 %v1010, 0.0
    %v1049 = vmax.f32 %v1015, 0.0
    %s1050 = scalar_lea.vmem %s3, 96
    %v1051 = vld [vmem:[%s1050] ss:$8 sm:$0x3]
    %s1052 = sld [smem:[#allocation2 + $0x2]]
    %v1053 = vstv %s1052
    %v1055 = vlaneseq
    %v1056 = vshrl.u32 %v1055, 7
    %v1057 = vsub.s32 0, %v1056
    %v1058 = vrot.slane %v1051, %v1057
    %v1059 = vlaneseq
    %v1060 = vshrl.u32 %v1059, 7
    %v1061 = vsub.s32 1, %v1060
    %v1062 = vrot.slane %v1051, %v1061
    %1065 = vmatprep.subr.mxu0 0.0
    %1066 = vmatpush1.msra.mxu0 %v1018
    %1067 = vmatprep.subr.mxu0 0.0
    %1068 = vmatpush1.msra.mxu0 %v1019
    %1069 = vmatprep.subr.mxu0 0.0
    %1070 = vmatpush1.msra.mxu0 %v1020
    %1071 = vmatprep.subr.mxu0 0.0
    %1072 = vmatpush1.msra.mxu0 %v1021
    %1073 = vmatprep.subr.mxu0 0.0
    %1074 = vmatpush1.msra.mxu0 %v1022
    %1075 = vmatprep.subr.mxu0 0.0
    %1076 = vmatpush1.msra.mxu0 %v1023
    %1077 = vmatprep.subr.mxu0 0.0
    %1078 = vmatpush1.msra.mxu0 %v1024
    %1079 = vmatprep.subr.mxu0 0.0
    %1080 = vmatpush1.msra.mxu0 %v1025
    %1081 = vmatprep.subr.mxu0 0.0
    %1082 = vmatpush1.msra.mxu0 %v1026
    %1083 = vmatprep.subr.mxu0 0.0
    %1084 = vmatpush1.msra.mxu0 %v1027
    %1085 = vmatprep.subr.mxu0 0.0
    %1086 = vmatpush1.msra.mxu0 %v1028
    %1087 = vmatprep.subr.mxu0 0.0
    %1088 = vmatpush1.msra.mxu0 %v1029
    %1089 = vmatprep.subr.mxu0 0.0
    %1090 = vmatpush1.msra.mxu0 %v1030
    %1091 = vmatprep.subr.mxu0 0.0
    %1092 = vmatpush1.msra.mxu0 %v1031
    %1093 = vmatprep.subr.mxu0 0.0
    %1094 = vmatpush1.msra.mxu0 %v1032
    %1095 = vmatprep.subr.mxu0 0.0
    %1096 = vmatpush1.msra.mxu0 %v1033
    %1097 = vmatprep.subr.mxu0 0.0
    %1098 = vmatpush1.msra.mxu0 %v1034
    %1099 = vmatprep.subr.mxu0 0.0
    %1100 = vmatpush1.msra.mxu0 %v1035
    %1101 = vmatprep.subr.mxu0 0.0
    %1102 = vmatpush1.msra.mxu0 %v1036
    %1103 = vmatprep.subr.mxu0 0.0
    %1104 = vmatpush1.msra.mxu0 %v1037
    %1105 = vmatprep.subr.mxu0 0.0
    %1106 = vmatpush1.msra.mxu0 %v1038
    %1107 = vmatprep.subr.mxu0 0.0
    %1108 = vmatpush1.msra.mxu0 %v1039
    %1109 = vmatprep.subr.mxu0 0.0
    %1110 = vmatpush1.msra.mxu0 %v1040
    %1111 = vmatprep.subr.mxu0 0.0
    %1112 = vmatpush1.msra.mxu0 %v1041
    %1113 = vmatprep.subr.mxu0 0.0
    %1114 = vmatpush1.msra.mxu0 %v1042
    %1115 = vmatprep.subr.mxu0 0.0
    %1116 = vmatpush1.msra.mxu0 %v1043
    %1117 = vmatprep.subr.mxu0 0.0
    %1118 = vmatpush1.msra.mxu0 %v1044
    %1119 = vmatprep.subr.mxu0 0.0
    %1120 = vmatpush1.msra.mxu0 %v1045
    %1121 = vmatprep.subr.mxu0 0.0
    %1122 = vmatpush1.msra.mxu0 %v1046
    %1123 = vmatprep.subr.mxu0 0.0
    %1124 = vmatpush1.msra.mxu0 %v1047
    %1125 = vmatprep.subr.mxu0 0.0
    %1126 = vmatpush1.msra.mxu0 %v1048
    %1127 = vmatprep.subr.mxu0 0.0
    %1128 = vmatpush1.msra.mxu0 %v1049
    %1129 = vmatprep.mubr.f32.mxu0 %v1062
    %1130 = vmatmul.mubr.f32.gmra.mrb[0].mxu0 %v1058
    %v1131 = vpop.f32.mrb[0].mxu0
    %v1132 = vadd.f32 %v1053, %v1131
    %v1133 = vpop.f32.mrb[0].mxu0
    %1134 = vdwg.mxu0
    %v1135 = vmax.f32 %v1132, 0.0
    %v1136 = vld [vmem:[%s3 + $0x61] ss:$0 sm:$0xff]
    %v1138 = vsel %vm728, %v1136, 0
    %1140 = vmatprep.subr.mxu0 0.0
    %1141 = vmatpush1.msra.mxu0 %v502
    %1142 = vmatprep.subr.mxu0 0.0
    %1143 = vmatpush1.msra.mxu0 0.0
    %1144 = vmatprep.subr.mxu0 0.0
    %1145 = vmatpush1.msra.mxu0 0.0
    %1146 = vmatprep.subr.mxu0 0.0
    %1147 = vmatpush1.msra.mxu0 0.0
    %1148 = vmatprep.subr.mxu0 0.0
    %1149 = vmatpush1.msra.mxu0 0.0
    %1150 = vmatprep.subr.mxu0 0.0
    %1151 = vmatpush1.msra.mxu0 0.0
    %1152 = vmatprep.subr.mxu0 0.0
    %1153 = vmatpush1.msra.mxu0 0.0
    %1154 = vmatprep.subr.mxu0 0.0
    %1155 = vmatpush1.msra.mxu0 0.0
    %1156 = vmatprep.subr.mxu0 0.0
    %1157 = vmatpush1.msra.mxu0 0.0
    %1158 = vmatprep.subr.mxu0 0.0
    %1159 = vmatpush1.msra.mxu0 0.0
    %1160 = vmatprep.subr.mxu0 0.0
    %1161 = vmatpush1.msra.mxu0 0.0
    %1162 = vmatprep.subr.mxu0 0.0
    %1163 = vmatpush1.msra.mxu0 0.0
    %1164 = vmatprep.subr.mxu0 0.0
    %1165 = vmatpush1.msra.mxu0 0.0
    %1166 = vmatprep.subr.mxu0 0.0
    %1167 = vmatpush1.msra.mxu0 0.0
    %1168 = vmatprep.subr.mxu0 0.0
    %1169 = vmatpush1.msra.mxu0 0.0
    %1170 = vmatprep.subr.mxu0 0.0
    %1171 = vmatpush1.msra.mxu0 0.0
    %1172 = vmatprep.subr.mxu0 0.0
    %1173 = vmatpush1.msra.mxu0 0.0
    %1174 = vmatprep.subr.mxu0 0.0
    %1175 = vmatpush1.msra.mxu0 0.0
    %1176 = vmatprep.subr.mxu0 0.0
    %1177 = vmatpush1.msra.mxu0 0.0
    %1178 = vmatprep.subr.mxu0 0.0
    %1179 = vmatpush1.msra.mxu0 0.0
    %1180 = vmatprep.subr.mxu0 0.0
    %1181 = vmatpush1.msra.mxu0 0.0
    %1182 = vmatprep.subr.mxu0 0.0
    %1183 = vmatpush1.msra.mxu0 0.0
    %1184 = vmatprep.subr.mxu0 0.0
    %1185 = vmatpush1.msra.mxu0 0.0
    %1186 = vmatprep.subr.mxu0 0.0
    %1187 = vmatpush1.msra.mxu0 0.0
    %1188 = vmatprep.subr.mxu0 0.0
    %1189 = vmatpush1.msra.mxu0 0.0
    %1190 = vmatprep.subr.mxu0 0.0
    %1191 = vmatpush1.msra.mxu0 0.0
    %1192 = vmatprep.subr.mxu0 0.0
    %1193 = vmatpush1.msra.mxu0 0.0
    %1194 = vmatprep.subr.mxu0 0.0
    %1195 = vmatpush1.msra.mxu0 0.0
    %1196 = vmatprep.subr.mxu0 0.0
    %1197 = vmatpush1.msra.mxu0 0.0
    %1198 = vmatprep.subr.mxu0 0.0
    %1199 = vmatpush1.msra.mxu0 0.0
    %1200 = vmatprep.subr.mxu0 0.0
    %1201 = vmatpush1.msra.mxu0 0.0
    %1202 = vmatprep.subr.mxu0 0.0
    %1203 = vmatpush1.msra.mxu0 0.0
    %1204 = vmatprep.mubr.f32.mxu0 0.0
    %1205 = vmatmul.mubr.f32.gmra.mrb[0].mxu0 %v1138
    %v1206 = vpop.f32.mrb[0].mxu0
    %v1207 = vadd.f32 0.0, %v1206
    %v1208 = vpop.f32.mrb[0].mxu0
    %1209 = vdwg.mxu0
    %s1210 = sld [smem:[#allocation2]]
    %v1211 = vstv %s1210
    %v1212 = vmul.f32 %v1211, %v1135
    %v1213 = vadd.f32 %v1212, %v1207
    %s1214 = sld [smem:[#allocation2 + $0x1]]
    %v1215 = vstv %s1214
    %v1216 = vadd.f32 %v1213, %v1215
    %v1217 = vsub.f32 0.0, %v1216
    %v1218 = vmul.f32 %v1217, 1.442695
    %v1219 = vpow.pop %v1218
    %v1220 = vadd.f32 %v1219, 1.0
    %v1221 = vrcp.pop %v1220
    %v1222 = vmul.f32 1.0, %v1221
    %vm1223 = vcmask 8192
    %1224 = vst.msk [vmem:[#allocation5] sm:$0x1] %vm1223, %v1222
    // Predicated region
    $region30: #{tpu_custom_call.1} parent=1 // pred_check
      _
    $region31: #{tpu_custom_call.1} parent=1 // pred_check_branch
      %1226 = sbr.rel (0) target = $region33
    $region32: #{tpu_custom_call.1} parent=1 // pred_region
      %s1228 = ssub.s32 16, 16
      %1229 = vsyncadd [#allocation3], %s1228
      %s1231 = sshll.u32 [#allocation5], 4
      %s1232 = int_to_ptr.vmem [resolvable:$true] %s1231
      %1234 = dma.vmem_to_hbm [thread:$0]  %s1232, 16, %s6, [#allocation3]
    $region33: #{tpu_custom_call.1} parent=1 // pred_fallthru
      _
    // Predicated region
    $region34: #{tpu_custom_call.1} parent=1 // pred_check
      _
    $region35: #{tpu_custom_call.1} parent=1 // pred_check_branch
      %1236 = sbr.rel (0) target = $region37
    $region36: #{tpu_custom_call.1} parent=1 // pred_region
      %1237 = dma.done [#allocation3], 16
    $region37: #{tpu_custom_call.1} parent=1 // pred_fallthru
      _
    %1238 = vsyncpa [#allocation3], 1
    %1239 = vsyncpa [#allocation4], 1

</llo_original>
